<compile_context>
chip_gen: v5e
topology: v5e:2x2
jax: 0.10.0
libtpu: 0.0.40
codegen_flags: <defaults>
</compile_context>

<pallas_src>
import jax
import jax.numpy as jnp
import numpy as np
from jax import lax
from jax.experimental import pallas as pl
from jax.experimental.pallas import tpu as pltpu


def _gru_encoder_kernel(x_ref, wih_ref, bfold_ref, whh_ref, bhn_ref,
                        whead_ref, bhead_ref, out_ref, gi_ref, h_ref):
    """One (batch-block, time-block) grid step.

    x_ref     : (tT, tb, D)   bf16  input slice for this time block
    wih_ref   : (D, 3Hp)      bf16  W_ih^T (gate-padded)
    bfold_ref : (1, 3Hp)      f32   b_ih + [b_hr, b_hz, 0]
    whh_ref   : (Hp, 3Hp)     bf16  W_hh^T (gate / row padded)
    bhn_ref   : (1, Hp)       f32   b_hn (scaled by reset gate -> kept separate)
    whead_ref : (Hp, 2Z)      bf16  [W_mu | W_logsigma]^T (fused head)
    bhead_ref : (1, 2Z)       f32   [b_mu | b_logsigma]
    out_ref   : (tb, 2Z)      f32   [mu | logsigma] (written on last time block only)
    gi_ref    : (tT, tb, 3Hp) f32   VMEM scratch: this block's input projection
    h_ref     : (tb, Hp)      f32   persistent hidden-state VMEM scratch
    """
    t_blk = pl.program_id(1)
    tT, tb, D = x_ref.shape
    Hp = whh_ref.shape[0]

    # Init hidden state at the start of each batch block's time sweep.
    @pl.when(t_blk == 0)
    def _():
        h_ref[...] = jnp.zeros_like(h_ref)

    # Time-parallel input projection for this block: one bf16 MXU matmul.
    gi = jnp.dot(x_ref[...].reshape(tT * tb, D), wih_ref[...],
                 preferred_element_type=jnp.float32) + bfold_ref[...]
    gi_ref[...] = gi.reshape(tT, tb, 3 * Hp)

    # Loop-invariant VMEM loads hoisted out of the recurrence.
    w_hh = whh_ref[...]
    b_hn = bhn_ref[...]

    def step(t, h):
        g = gi_ref[t]                                              # (tb, 3Hp) f32
        gh = jnp.dot(h.astype(jnp.bfloat16), w_hh,                 # bf16 operands,
                     preferred_element_type=jnp.float32)           # f32 accumulate
        # Hp is a multiple of 128 -> all gate slices are lane-aligned.
        r = jax.nn.sigmoid(g[:, :Hp] + gh[:, :Hp])
        z = jax.nn.sigmoid(g[:, Hp:2 * Hp] + gh[:, Hp:2 * Hp])
        n = jnp.tanh(g[:, 2 * Hp:] + r * (gh[:, 2 * Hp:] + b_hn))
        return n + z * (h - n)                                     # == (1-z)*n + z*h

    h_ref[...] = lax.fori_loop(0, tT, step, h_ref[...],
                               unroll=(True if tT <= 32 else 8))

    # Fused output heads: one (tb, Hp) @ (Hp, 2Z) matmul, single store, last block only.
    @pl.when(t_blk == pl.num_programs(1) - 1)
    def _():
        out = jnp.dot(h_ref[...].astype(jnp.bfloat16), whead_ref[...],
                      preferred_element_type=jnp.float32) + bhead_ref[...]
        out_ref[...] = out.astype(out_ref.dtype)


def _largest_divisor_leq(n, cap):
    cap = int(max(1, min(n, cap)))
    for d in range(cap, 0, -1):
        if n % d == 0:
            return d
    return 1


def _pad_gates(a, H, Hp):
    """Pad each of the three gate chunks along the last (3H) axis out to Hp."""
    pad = [(0, 0)] * (a.ndim - 1) + [(0, Hp - H)]
    parts = [jnp.pad(a[..., i * H:(i + 1) * H], pad) for i in range(3)]
    return jnp.concatenate(parts, axis=-1)


@jax.jit
def encoder_forward(x, params):
    """x: (B, T, D) float32, batch_first like the PyTorch module. Returns (mu, logsigma)."""
    B, T, D = x.shape
    H = params["w_hh"].shape[0]          # w_hh stored transposed: (H, 3H)
    Z = params["w_mu"].shape[1]          # w_mu stored transposed: (H, Z)

    # Hidden width padded to a lane multiple (exact: padded columns stay zero).
    Hp = ((H + 127) // 128) * 128

    # Batch: pad to a sublane multiple; beyond one MXU tile, block at 128 rows so
    # the "parallel" batch grid axis can shard across v7x's two TensorCores.
    if B <= 128:
        Bp = ((B + 7) // 8) * 8
        tb = Bp
    else:
        Bp = ((B + 127) // 128) * 128
        tb = 128
    nb = Bp // tb

    # Time block: largest divisor of T fitting a modest per-block VMEM budget
    # (f32 gi scratch + double-buffered bf16 x block).
    budget = 4 << 20
    per_t = tb * (3 * Hp * 4 + 2 * D * 2)
    tT = _largest_divisor_leq(T, budget // max(per_t, 1))
    nt = T // tT

    # ---- parameter prep (gate order r, z, n) ----
    b_fold = params["b_ih"] + jnp.concatenate(
        [params["b_hh"][:, 0:H], params["b_hh"][:, H:2 * H],
         jnp.zeros((1, H), jnp.float32)], axis=1)
    b_fold = _pad_gates(b_fold, H, Hp)                                   # (1, 3Hp)
    b_hn = jnp.pad(params["b_hh"][:, 2 * H:3 * H],
                   ((0, 0), (0, Hp - H)))                                # (1, Hp)

    w_ih = _pad_gates(params["w_ih"], H, Hp).astype(jnp.bfloat16)        # (D, 3Hp)
    w_hh = jnp.pad(_pad_gates(params["w_hh"], H, Hp),
                   ((0, Hp - H), (0, 0))).astype(jnp.bfloat16)           # (Hp, 3Hp)
    w_head = jnp.pad(jnp.concatenate([params["w_mu"], params["w_ls"]], axis=1),
                     ((0, Hp - H), (0, 0))).astype(jnp.bfloat16)         # (Hp, 2Z)
    b_head = jnp.concatenate([params["b_mu"], params["b_ls"]], axis=1)   # (1, 2Z)

    # ---- input prep: pad batch, time-major (moves D, not 3H, bytes), bf16 operand ----
    x_t = jnp.pad(x, ((0, Bp - B), (0, 0), (0, 0)))
    x_t = jnp.transpose(x_t, (1, 0, 2)).astype(jnp.bfloat16)             # (T, Bp, D)

    # Explicit scoped-VMEM limit with headroom (sized for v7x's 64 MiB as well).
    est = (2 * tT * tb * D * 2                               # x block, double-buffered
           + tT * tb * 3 * Hp * 4                            # gi scratch
           + tb * Hp * 4                                     # h scratch
           + 2 * tb * 2 * Z * 4                              # output block
           + (D + Hp) * 3 * Hp * 2 + Hp * 2 * Z * 2          # bf16 weights
           + (3 * Hp + Hp + 2 * Z) * 4)                      # biases
    vmem_limit = int(min(max(2 * est, 16 << 20), 64 << 20))

    grid_spec = pltpu.PrefetchScalarGridSpec(
        num_scalar_prefetch=0,
        grid=(nb, nt),
        in_specs=[
            pl.BlockSpec((tT, tb, D), lambda b, t: (t, b, 0)),       # x time block
            pl.BlockSpec((D, 3 * Hp), lambda b, t: (0, 0)),          # W_ih^T
            pl.BlockSpec((1, 3 * Hp), lambda b, t: (0, 0)),          # folded bias
            pl.BlockSpec((Hp, 3 * Hp), lambda b, t: (0, 0)),         # W_hh^T
            pl.BlockSpec((1, Hp), lambda b, t: (0, 0)),              # b_hn
            pl.BlockSpec((Hp, 2 * Z), lambda b, t: (0, 0)),          # fused head W
            pl.BlockSpec((1, 2 * Z), lambda b, t: (0, 0)),           # fused head b
        ],
        out_specs=pl.BlockSpec((tb, 2 * Z), lambda b, t: (b, 0)),
        scratch_shapes=[
            pltpu.VMEM((tT, tb, 3 * Hp), jnp.float32),   # per-block input projection
            pltpu.VMEM((tb, Hp), jnp.float32),           # persistent hidden state
        ],
    )

    out = pl.pallas_call(
        _gru_encoder_kernel,
        out_shape=jax.ShapeDtypeStruct((Bp, 2 * Z), jnp.float32),
        grid_spec=grid_spec,
        compiler_params=pltpu.CompilerParams(
            dimension_semantics=("parallel", "arbitrary"),
            vmem_limit_bytes=vmem_limit),
    )(x_t, w_ih, b_fold, w_hh, b_hn, w_head, b_head)

    mu = out[:B, :Z]
    logsig = out[:B, Z:]
    return mu, logsig


def init_params(key, input_dim, hidden_dim, z_dim):
    """Deterministic synthetic init (PyTorch-style uniform ranges)."""
    ks = jax.random.split(key, 8)
    s_rnn = 1.0 / np.sqrt(hidden_dim)
    s_fc = 1.0 / np.sqrt(hidden_dim)
    u = lambda k, shape, s: jax.random.uniform(k, shape, jnp.float32, -s, s)
    return {
        # stored pre-transposed so kernels do plain (B,*) @ (*,N) matmuls
        "w_ih": u(ks[0], (input_dim, 3 * hidden_dim), s_rnn),
        "w_hh": u(ks[1], (hidden_dim, 3 * hidden_dim), s_rnn),
        "b_ih": u(ks[2], (1, 3 * hidden_dim), s_rnn),
        "b_hh": u(ks[3], (1, 3 * hidden_dim), s_rnn),
        "w_mu": u(ks[4], (hidden_dim, z_dim), s_fc),
        "b_mu": u(ks[5], (1, z_dim), s_fc),
        "w_ls": u(ks[6], (hidden_dim, z_dim), s_fc),
        "b_ls": u(ks[7], (1, z_dim), s_fc),
    }


def encoder_reference(x, params):
    """Pure-JAX f32 reference matching torch.nn.GRU semantics (gate order r, z, n)."""
    B, T, D = x.shape
    H = params["w_hh"].shape[1] // 3

    def step(h, x_t):
        gi = x_t @ params["w_ih"] + params["b_ih"]
        gh = h @ params["w_hh"] + params["b_hh"]
        i_r, i_z, i_n = gi[:, :H], gi[:, H:2 * H], gi[:, 2 * H:]
        h_r, h_z, h_n = gh[:, :H], gh[:, H:2 * H], gh[:, 2 * H:]
        r = jax.nn.sigmoid(i_r + h_r)
        z = jax.nn.sigmoid(i_z + h_z)
        n = jnp.tanh(i_n + r * h_n)
        h_new = (1.0 - z) * n + z * h
        return h_new, None

    h0 = jnp.zeros((B, H), jnp.float32)
    h_last, _ = lax.scan(step, h0, jnp.transpose(x, (1, 0, 2)))
    mu = h_last @ params["w_mu"] + params["b_mu"]
    logsig = h_last @ params["w_ls"] + params["b_ls"]
    return mu, logsig


if __name__ == "__main__":
    B, T, D, H, Z = 2, 8, 4, 32, 16

    key = jax.random.PRNGKey(0)
    kx, kp = jax.random.split(key)
    x = jax.random.normal(kx, (B, T, D), jnp.float32)
    params = init_params(kp, D, H, Z)

    mu, logsig = encoder_forward(x, params)
    jax.block_until_ready((mu, logsig))

    mu_ref, ls_ref = encoder_reference(x, params)
    # Tolerance accounts for bf16 matmul operands (x, W_ih, W_hh, head) vs the f32
    # reference; the hidden state and gate math are f32.
    np.testing.assert_allclose(np.asarray(mu), np.asarray(mu_ref), atol=3e-2, rtol=3e-2)
    np.testing.assert_allclose(np.asarray(logsig), np.asarray(ls_ref), atol=3e-2, rtol=3e-2)

    print("KERNEL_OK")
</pallas_src>

<mosaic_0001>
module attributes {stable_mosaic.version = 11 : i64} {
  func.func @_gru_encoder_kernel(%arg0: i32, %arg1: i32, %arg2: memref<8x8x4xbf16, #tpu.memory_space<vmem>>, %arg3: memref<4x384xbf16, #tpu.memory_space<vmem>>, %arg4: memref<1x384xf32, #tpu.memory_space<vmem>>, %arg5: memref<128x384xbf16, #tpu.memory_space<vmem>>, %arg6: memref<1x128xf32, #tpu.memory_space<vmem>>, %arg7: memref<128x32xbf16, #tpu.memory_space<vmem>>, %arg8: memref<1x32xf32, #tpu.memory_space<vmem>>, %arg9: memref<8x32xf32, #tpu.memory_space<vmem>>, %arg10: memref<8x8x384xf32, #tpu.memory_space<vmem>>, %arg11: memref<8x128xf32, #tpu.memory_space<vmem>>) attributes {dimension_semantics = [#tpu.dimension_semantics<parallel>, #tpu.dimension_semantics<arbitrary>], iteration_bounds = array<i64: 1, 1>, scalar_prefetch = 0 : i64, scratch_operands = 2 : i64, tpu.core_type = #tpu.core_type<tc>, window_params = [{transform_indices = @transform_0, window_bounds = array<i64: 8, 8, 4>}, {pipeline_mode = #tpu.pipeline_mode<synchronous>, transform_indices = @transform_1, window_bounds = array<i64: 4, 384>}, {pipeline_mode = #tpu.pipeline_mode<synchronous>, transform_indices = @transform_2, window_bounds = array<i64: 1, 384>}, {pipeline_mode = #tpu.pipeline_mode<synchronous>, transform_indices = @transform_3, window_bounds = array<i64: 128, 384>}, {pipeline_mode = #tpu.pipeline_mode<synchronous>, transform_indices = @transform_4, window_bounds = array<i64: 1, 128>}, {pipeline_mode = #tpu.pipeline_mode<synchronous>, transform_indices = @transform_5, window_bounds = array<i64: 128, 32>}, {pipeline_mode = #tpu.pipeline_mode<synchronous>, transform_indices = @transform_6, window_bounds = array<i64: 1, 32>}, {transform_indices = @transform_7, window_bounds = array<i64: 8, 32>}]} {
    %c0_i32 = arith.constant 0 : i32
    %0 = arith.cmpi eq, %arg1, %c0_i32 : i32
    %1 = arith.extui %0 : i1 to i32
    %c0_i32_0 = arith.constant 0 : i32
    %2 = arith.cmpi ne, %1, %c0_i32_0 : i32
    scf.if %2 {
      %cst_61 = arith.constant 0.000000e+00 : f32
      %267 = vector.broadcast %cst_61 : f32 to vector<8x128xf32>
      %c0_62 = arith.constant 0 : index
      %c0_63 = arith.constant 0 : index
      %268 = vector.load %arg11[%c0_62, %c0_63] : memref<8x128xf32, #tpu.memory_space<vmem>>, vector<8x128xf32>
      tpu.vector_store %arg11[%c0_62, %c0_63], %267 {strides = array<i32>} : memref<8x128xf32, #tpu.memory_space<vmem>>, vector<8x128xf32>,
    } else {
    }
    %c0 = arith.constant 0 : index
    %c0_1 = arith.constant 0 : index
    %c0_2 = arith.constant 0 : index
    %3 = vector.load %arg2[%c0, %c0_1, %c0_2] : memref<8x8x4xbf16, #tpu.memory_space<vmem>>, vector<8x8x4xbf16>
    %4 = vector.shape_cast %3 : vector<8x8x4xbf16> to vector<64x4xbf16>
    %c0_3 = arith.constant 0 : index
    %c0_4 = arith.constant 0 : index
    %5 = vector.load %arg3[%c0_3, %c0_4] : memref<4x384xbf16, #tpu.memory_space<vmem>>, vector<4x384xbf16>
    %cst = arith.constant dense<0.000000e+00> : vector<64x384xf32>
    %6 = tpu.matmul %4, %5, %cst {dimension_numbers = #tpu.dot_dimension_numbers<[1], [0], [0], [1], [0, 0, 1, 1], [], []>} : vector<64x4xbf16>, vector<4x384xbf16>, vector<64x384xf32> -> vector<64x384xf32>
    %c0_5 = arith.constant 0 : index
    %c0_6 = arith.constant 0 : index
    %7 = vector.load %arg4[%c0_5, %c0_6] : memref<1x384xf32, #tpu.memory_space<vmem>>, vector<1x384xf32>
    %8 = vector.broadcast %7 : vector<1x384xf32> to vector<64x384xf32>
    %9 = arith.addf %6, %8 : vector<64x384xf32>
    %10 = vector.shape_cast %9 : vector<64x384xf32> to vector<8x8x384xf32>
    %c0_7 = arith.constant 0 : index
    %c0_8 = arith.constant 0 : index
    %c0_9 = arith.constant 0 : index
    %11 = vector.load %arg10[%c0_7, %c0_8, %c0_9] : memref<8x8x384xf32, #tpu.memory_space<vmem>>, vector<8x8x384xf32>
    tpu.vector_store %arg10[%c0_7, %c0_8, %c0_9], %10 {strides = array<i32>} : memref<8x8x384xf32, #tpu.memory_space<vmem>>, vector<8x8x384xf32>,
    %c0_10 = arith.constant 0 : index
    %c0_11 = arith.constant 0 : index
    %12 = vector.load %arg5[%c0_10, %c0_11] : memref<128x384xbf16, #tpu.memory_space<vmem>>, vector<128x384xbf16>
    %c0_12 = arith.constant 0 : index
    %c0_13 = arith.constant 0 : index
    %13 = vector.load %arg6[%c0_12, %c0_13] : memref<1x128xf32, #tpu.memory_space<vmem>>, vector<1x128xf32>
    %c0_14 = arith.constant 0 : index
    %c0_15 = arith.constant 0 : index
    %14 = vector.load %arg11[%c0_14, %c0_15] : memref<8x128xf32, #tpu.memory_space<vmem>>, vector<8x128xf32>
    %c0_i32_16 = arith.constant 0 : i32
    %15 = arith.index_cast %c0_i32_16 : i32 to index
    %c0_17 = arith.constant 0 : index
    %c0_18 = arith.constant 0 : index
    %16 = vector.load %arg10[%15, %c0_17, %c0_18] : memref<8x8x384xf32, #tpu.memory_space<vmem>>, vector<1x8x384xf32>
    %17 = vector.shape_cast %16 : vector<1x8x384xf32> to vector<8x384xf32>
    %18 = arith.truncf %14 : vector<8x128xf32> to vector<8x128xbf16>
    %cst_19 = arith.constant dense<0.000000e+00> : vector<8x384xf32>
    %19 = tpu.matmul %18, %12, %cst_19 {dimension_numbers = #tpu.dot_dimension_numbers<[1], [0], [0], [1], [0, 0, 1, 1], [], []>} : vector<8x128xbf16>, vector<128x384xbf16>, vector<8x384xf32> -> vector<8x384xf32>
    %20 = vector.extract_strided_slice %17 {offsets = [0, 0], sizes = [8, 128], strides = [1, 1]} : vector<8x384xf32> to vector<8x128xf32>
    %21 = vector.extract_strided_slice %19 {offsets = [0, 0], sizes = [8, 128], strides = [1, 1]} : vector<8x384xf32> to vector<8x128xf32>
    %22 = arith.addf %20, %21 : vector<8x128xf32>
    %23 = arith.negf %22 : vector<8x128xf32>
    %24 = math.exp %23 : vector<8x128xf32>
    %cst_20 = arith.constant 1.000000e+00 : f32
    %25 = vector.broadcast %cst_20 : f32 to vector<8x128xf32>
    %26 = arith.addf %25, %24 : vector<8x128xf32>
    %27 = arith.divf %25, %26 : vector<8x128xf32>
    %28 = vector.extract_strided_slice %17 {offsets = [0, 128], sizes = [8, 128], strides = [1, 1]} : vector<8x384xf32> to vector<8x128xf32>
    %29 = vector.extract_strided_slice %19 {offsets = [0, 128], sizes = [8, 128], strides = [1, 1]} : vector<8x384xf32> to vector<8x128xf32>
    %30 = arith.addf %28, %29 : vector<8x128xf32>
    %31 = arith.negf %30 : vector<8x128xf32>
    %32 = math.exp %31 : vector<8x128xf32>
    %cst_21 = arith.constant 1.000000e+00 : f32
    %33 = vector.broadcast %cst_21 : f32 to vector<8x128xf32>
    %34 = arith.addf %33, %32 : vector<8x128xf32>
    %35 = arith.divf %33, %34 : vector<8x128xf32>
    %36 = vector.extract_strided_slice %17 {offsets = [0, 256], sizes = [8, 128], strides = [1, 1]} : vector<8x384xf32> to vector<8x128xf32>
    %37 = vector.extract_strided_slice %19 {offsets = [0, 256], sizes = [8, 128], strides = [1, 1]} : vector<8x384xf32> to vector<8x128xf32>
    %38 = vector.broadcast %13 : vector<1x128xf32> to vector<8x128xf32>
    %39 = arith.addf %37, %38 : vector<8x128xf32>
    %40 = arith.mulf %27, %39 : vector<8x128xf32>
    %41 = arith.addf %36, %40 : vector<8x128xf32>
    %42 = math.tanh %41 : vector<8x128xf32>
    %43 = arith.subf %14, %42 : vector<8x128xf32>
    %44 = arith.mulf %35, %43 : vector<8x128xf32>
    %45 = arith.addf %42, %44 : vector<8x128xf32>
    %c1_i32 = arith.constant 1 : i32
    %46 = arith.index_cast %c1_i32 : i32 to index
    %c0_22 = arith.constant 0 : index
    %c0_23 = arith.constant 0 : index
    %47 = vector.load %arg10[%46, %c0_22, %c0_23] : memref<8x8x384xf32, #tpu.memory_space<vmem>>, vector<1x8x384xf32>
    %48 = vector.shape_cast %47 : vector<1x8x384xf32> to vector<8x384xf32>
    %49 = arith.truncf %45 : vector<8x128xf32> to vector<8x128xbf16>
    %cst_24 = arith.constant dense<0.000000e+00> : vector<8x384xf32>
    %50 = tpu.matmul %49, %12, %cst_24 {dimension_numbers = #tpu.dot_dimension_numbers<[1], [0], [0], [1], [0, 0, 1, 1], [], []>} : vector<8x128xbf16>, vector<128x384xbf16>, vector<8x384xf32> -> vector<8x384xf32>
    %51 = vector.extract_strided_slice %48 {offsets = [0, 0], sizes = [8, 128], strides = [1, 1]} : vector<8x384xf32> to vector<8x128xf32>
    %52 = vector.extract_strided_slice %50 {offsets = [0, 0], sizes = [8, 128], strides = [1, 1]} : vector<8x384xf32> to vector<8x128xf32>
    %53 = arith.addf %51, %52 : vector<8x128xf32>
    %54 = arith.negf %53 : vector<8x128xf32>
    %55 = math.exp %54 : vector<8x128xf32>
    %cst_25 = arith.constant 1.000000e+00 : f32
    %56 = vector.broadcast %cst_25 : f32 to vector<8x128xf32>
    %57 = arith.addf %56, %55 : vector<8x128xf32>
    %58 = arith.divf %56, %57 : vector<8x128xf32>
    %59 = vector.extract_strided_slice %48 {offsets = [0, 128], sizes = [8, 128], strides = [1, 1]} : vector<8x384xf32> to vector<8x128xf32>
    %60 = vector.extract_strided_slice %50 {offsets = [0, 128], sizes = [8, 128], strides = [1, 1]} : vector<8x384xf32> to vector<8x128xf32>
    %61 = arith.addf %59, %60 : vector<8x128xf32>
    %62 = arith.negf %61 : vector<8x128xf32>
    %63 = math.exp %62 : vector<8x128xf32>
    %cst_26 = arith.constant 1.000000e+00 : f32
    %64 = vector.broadcast %cst_26 : f32 to vector<8x128xf32>
    %65 = arith.addf %64, %63 : vector<8x128xf32>
    %66 = arith.divf %64, %65 : vector<8x128xf32>
    %67 = vector.extract_strided_slice %48 {offsets = [0, 256], sizes = [8, 128], strides = [1, 1]} : vector<8x384xf32> to vector<8x128xf32>
    %68 = vector.extract_strided_slice %50 {offsets = [0, 256], sizes = [8, 128], strides = [1, 1]} : vector<8x384xf32> to vector<8x128xf32>
    %69 = vector.broadcast %13 : vector<1x128xf32> to vector<8x128xf32>
    %70 = arith.addf %68, %69 : vector<8x128xf32>
    %71 = arith.mulf %58, %70 : vector<8x128xf32>
    %72 = arith.addf %67, %71 : vector<8x128xf32>
    %73 = math.tanh %72 : vector<8x128xf32>
    %74 = arith.subf %45, %73 : vector<8x128xf32>
    %75 = arith.mulf %66, %74 : vector<8x128xf32>
    %76 = arith.addf %73, %75 : vector<8x128xf32>
    %c2_i32 = arith.constant 2 : i32
    %77 = arith.index_cast %c2_i32 : i32 to index
    %c0_27 = arith.constant 0 : index
    %c0_28 = arith.constant 0 : index
    %78 = vector.load %arg10[%77, %c0_27, %c0_28] : memref<8x8x384xf32, #tpu.memory_space<vmem>>, vector<1x8x384xf32>
    %79 = vector.shape_cast %78 : vector<1x8x384xf32> to vector<8x384xf32>
    %80 = arith.truncf %76 : vector<8x128xf32> to vector<8x128xbf16>
    %cst_29 = arith.constant dense<0.000000e+00> : vector<8x384xf32>
    %81 = tpu.matmul %80, %12, %cst_29 {dimension_numbers = #tpu.dot_dimension_numbers<[1], [0], [0], [1], [0, 0, 1, 1], [], []>} : vector<8x128xbf16>, vector<128x384xbf16>, vector<8x384xf32> -> vector<8x384xf32>
    %82 = vector.extract_strided_slice %79 {offsets = [0, 0], sizes = [8, 128], strides = [1, 1]} : vector<8x384xf32> to vector<8x128xf32>
    %83 = vector.extract_strided_slice %81 {offsets = [0, 0], sizes = [8, 128], strides = [1, 1]} : vector<8x384xf32> to vector<8x128xf32>
    %84 = arith.addf %82, %83 : vector<8x128xf32>
    %85 = arith.negf %84 : vector<8x128xf32>
    %86 = math.exp %85 : vector<8x128xf32>
    %cst_30 = arith.constant 1.000000e+00 : f32
    %87 = vector.broadcast %cst_30 : f32 to vector<8x128xf32>
    %88 = arith.addf %87, %86 : vector<8x128xf32>
    %89 = arith.divf %87, %88 : vector<8x128xf32>
    %90 = vector.extract_strided_slice %79 {offsets = [0, 128], sizes = [8, 128], strides = [1, 1]} : vector<8x384xf32> to vector<8x128xf32>
    %91 = vector.extract_strided_slice %81 {offsets = [0, 128], sizes = [8, 128], strides = [1, 1]} : vector<8x384xf32> to vector<8x128xf32>
    %92 = arith.addf %90, %91 : vector<8x128xf32>
    %93 = arith.negf %92 : vector<8x128xf32>
    %94 = math.exp %93 : vector<8x128xf32>
    %cst_31 = arith.constant 1.000000e+00 : f32
    %95 = vector.broadcast %cst_31 : f32 to vector<8x128xf32>
    %96 = arith.addf %95, %94 : vector<8x128xf32>
    %97 = arith.divf %95, %96 : vector<8x128xf32>
    %98 = vector.extract_strided_slice %79 {offsets = [0, 256], sizes = [8, 128], strides = [1, 1]} : vector<8x384xf32> to vector<8x128xf32>
    %99 = vector.extract_strided_slice %81 {offsets = [0, 256], sizes = [8, 128], strides = [1, 1]} : vector<8x384xf32> to vector<8x128xf32>
    %100 = vector.broadcast %13 : vector<1x128xf32> to vector<8x128xf32>
    %101 = arith.addf %99, %100 : vector<8x128xf32>
    %102 = arith.mulf %89, %101 : vector<8x128xf32>
    %103 = arith.addf %98, %102 : vector<8x128xf32>
    %104 = math.tanh %103 : vector<8x128xf32>
    %105 = arith.subf %76, %104 : vector<8x128xf32>
    %106 = arith.mulf %97, %105 : vector<8x128xf32>
    %107 = arith.addf %104, %106 : vector<8x128xf32>
    %c3_i32 = arith.constant 3 : i32
    %108 = arith.index_cast %c3_i32 : i32 to index
    %c0_32 = arith.constant 0 : index
    %c0_33 = arith.constant 0 : index
    %109 = vector.load %arg10[%108, %c0_32, %c0_33] : memref<8x8x384xf32, #tpu.memory_space<vmem>>, vector<1x8x384xf32>
    %110 = vector.shape_cast %109 : vector<1x8x384xf32> to vector<8x384xf32>
    %111 = arith.truncf %107 : vector<8x128xf32> to vector<8x128xbf16>
    %cst_34 = arith.constant dense<0.000000e+00> : vector<8x384xf32>
    %112 = tpu.matmul %111, %12, %cst_34 {dimension_numbers = #tpu.dot_dimension_numbers<[1], [0], [0], [1], [0, 0, 1, 1], [], []>} : vector<8x128xbf16>, vector<128x384xbf16>, vector<8x384xf32> -> vector<8x384xf32>
    %113 = vector.extract_strided_slice %110 {offsets = [0, 0], sizes = [8, 128], strides = [1, 1]} : vector<8x384xf32> to vector<8x128xf32>
    %114 = vector.extract_strided_slice %112 {offsets = [0, 0], sizes = [8, 128], strides = [1, 1]} : vector<8x384xf32> to vector<8x128xf32>
    %115 = arith.addf %113, %114 : vector<8x128xf32>
    %116 = arith.negf %115 : vector<8x128xf32>
    %117 = math.exp %116 : vector<8x128xf32>
    %cst_35 = arith.constant 1.000000e+00 : f32
    %118 = vector.broadcast %cst_35 : f32 to vector<8x128xf32>
    %119 = arith.addf %118, %117 : vector<8x128xf32>
    %120 = arith.divf %118, %119 : vector<8x128xf32>
    %121 = vector.extract_strided_slice %110 {offsets = [0, 128], sizes = [8, 128], strides = [1, 1]} : vector<8x384xf32> to vector<8x128xf32>
    %122 = vector.extract_strided_slice %112 {offsets = [0, 128], sizes = [8, 128], strides = [1, 1]} : vector<8x384xf32> to vector<8x128xf32>
    %123 = arith.addf %121, %122 : vector<8x128xf32>
    %124 = arith.negf %123 : vector<8x128xf32>
    %125 = math.exp %124 : vector<8x128xf32>
    %cst_36 = arith.constant 1.000000e+00 : f32
    %126 = vector.broadcast %cst_36 : f32 to vector<8x128xf32>
    %127 = arith.addf %126, %125 : vector<8x128xf32>
    %128 = arith.divf %126, %127 : vector<8x128xf32>
    %129 = vector.extract_strided_slice %110 {offsets = [0, 256], sizes = [8, 128], strides = [1, 1]} : vector<8x384xf32> to vector<8x128xf32>
    %130 = vector.extract_strided_slice %112 {offsets = [0, 256], sizes = [8, 128], strides = [1, 1]} : vector<8x384xf32> to vector<8x128xf32>
    %131 = vector.broadcast %13 : vector<1x128xf32> to vector<8x128xf32>
    %132 = arith.addf %130, %131 : vector<8x128xf32>
    %133 = arith.mulf %120, %132 : vector<8x128xf32>
    %134 = arith.addf %129, %133 : vector<8x128xf32>
    %135 = math.tanh %134 : vector<8x128xf32>
    %136 = arith.subf %107, %135 : vector<8x128xf32>
    %137 = arith.mulf %128, %136 : vector<8x128xf32>
    %138 = arith.addf %135, %137 : vector<8x128xf32>
    %c4_i32 = arith.constant 4 : i32
    %139 = arith.index_cast %c4_i32 : i32 to index
    %c0_37 = arith.constant 0 : index
    %c0_38 = arith.constant 0 : index
    %140 = vector.load %arg10[%139, %c0_37, %c0_38] : memref<8x8x384xf32, #tpu.memory_space<vmem>>, vector<1x8x384xf32>
    %141 = vector.shape_cast %140 : vector<1x8x384xf32> to vector<8x384xf32>
    %142 = arith.truncf %138 : vector<8x128xf32> to vector<8x128xbf16>
    %cst_39 = arith.constant dense<0.000000e+00> : vector<8x384xf32>
    %143 = tpu.matmul %142, %12, %cst_39 {dimension_numbers = #tpu.dot_dimension_numbers<[1], [0], [0], [1], [0, 0, 1, 1], [], []>} : vector<8x128xbf16>, vector<128x384xbf16>, vector<8x384xf32> -> vector<8x384xf32>
    %144 = vector.extract_strided_slice %141 {offsets = [0, 0], sizes = [8, 128], strides = [1, 1]} : vector<8x384xf32> to vector<8x128xf32>
    %145 = vector.extract_strided_slice %143 {offsets = [0, 0], sizes = [8, 128], strides = [1, 1]} : vector<8x384xf32> to vector<8x128xf32>
    %146 = arith.addf %144, %145 : vector<8x128xf32>
    %147 = arith.negf %146 : vector<8x128xf32>
    %148 = math.exp %147 : vector<8x128xf32>
    %cst_40 = arith.constant 1.000000e+00 : f32
    %149 = vector.broadcast %cst_40 : f32 to vector<8x128xf32>
    %150 = arith.addf %149, %148 : vector<8x128xf32>
    %151 = arith.divf %149, %150 : vector<8x128xf32>
    %152 = vector.extract_strided_slice %141 {offsets = [0, 128], sizes = [8, 128], strides = [1, 1]} : vector<8x384xf32> to vector<8x128xf32>
    %153 = vector.extract_strided_slice %143 {offsets = [0, 128], sizes = [8, 128], strides = [1, 1]} : vector<8x384xf32> to vector<8x128xf32>
    %154 = arith.addf %152, %153 : vector<8x128xf32>
    %155 = arith.negf %154 : vector<8x128xf32>
    %156 = math.exp %155 : vector<8x128xf32>
    %cst_41 = arith.constant 1.000000e+00 : f32
    %157 = vector.broadcast %cst_41 : f32 to vector<8x128xf32>
    %158 = arith.addf %157, %156 : vector<8x128xf32>
    %159 = arith.divf %157, %158 : vector<8x128xf32>
    %160 = vector.extract_strided_slice %141 {offsets = [0, 256], sizes = [8, 128], strides = [1, 1]} : vector<8x384xf32> to vector<8x128xf32>
    %161 = vector.extract_strided_slice %143 {offsets = [0, 256], sizes = [8, 128], strides = [1, 1]} : vector<8x384xf32> to vector<8x128xf32>
    %162 = vector.broadcast %13 : vector<1x128xf32> to vector<8x128xf32>
    %163 = arith.addf %161, %162 : vector<8x128xf32>
    %164 = arith.mulf %151, %163 : vector<8x128xf32>
    %165 = arith.addf %160, %164 : vector<8x128xf32>
    %166 = math.tanh %165 : vector<8x128xf32>
    %167 = arith.subf %138, %166 : vector<8x128xf32>
    %168 = arith.mulf %159, %167 : vector<8x128xf32>
    %169 = arith.addf %166, %168 : vector<8x128xf32>
    %c5_i32 = arith.constant 5 : i32
    %170 = arith.index_cast %c5_i32 : i32 to index
    %c0_42 = arith.constant 0 : index
    %c0_43 = arith.constant 0 : index
    %171 = vector.load %arg10[%170, %c0_42, %c0_43] : memref<8x8x384xf32, #tpu.memory_space<vmem>>, vector<1x8x384xf32>
    %172 = vector.shape_cast %171 : vector<1x8x384xf32> to vector<8x384xf32>
    %173 = arith.truncf %169 : vector<8x128xf32> to vector<8x128xbf16>
    %cst_44 = arith.constant dense<0.000000e+00> : vector<8x384xf32>
    %174 = tpu.matmul %173, %12, %cst_44 {dimension_numbers = #tpu.dot_dimension_numbers<[1], [0], [0], [1], [0, 0, 1, 1], [], []>} : vector<8x128xbf16>, vector<128x384xbf16>, vector<8x384xf32> -> vector<8x384xf32>
    %175 = vector.extract_strided_slice %172 {offsets = [0, 0], sizes = [8, 128], strides = [1, 1]} : vector<8x384xf32> to vector<8x128xf32>
    %176 = vector.extract_strided_slice %174 {offsets = [0, 0], sizes = [8, 128], strides = [1, 1]} : vector<8x384xf32> to vector<8x128xf32>
    %177 = arith.addf %175, %176 : vector<8x128xf32>
    %178 = arith.negf %177 : vector<8x128xf32>
    %179 = math.exp %178 : vector<8x128xf32>
    %cst_45 = arith.constant 1.000000e+00 : f32
    %180 = vector.broadcast %cst_45 : f32 to vector<8x128xf32>
    %181 = arith.addf %180, %179 : vector<8x128xf32>
    %182 = arith.divf %180, %181 : vector<8x128xf32>
    %183 = vector.extract_strided_slice %172 {offsets = [0, 128], sizes = [8, 128], strides = [1, 1]} : vector<8x384xf32> to vector<8x128xf32>
    %184 = vector.extract_strided_slice %174 {offsets = [0, 128], sizes = [8, 128], strides = [1, 1]} : vector<8x384xf32> to vector<8x128xf32>
    %185 = arith.addf %183, %184 : vector<8x128xf32>
    %186 = arith.negf %185 : vector<8x128xf32>
    %187 = math.exp %186 : vector<8x128xf32>
    %cst_46 = arith.constant 1.000000e+00 : f32
    %188 = vector.broadcast %cst_46 : f32 to vector<8x128xf32>
    %189 = arith.addf %188, %187 : vector<8x128xf32>
    %190 = arith.divf %188, %189 : vector<8x128xf32>
    %191 = vector.extract_strided_slice %172 {offsets = [0, 256], sizes = [8, 128], strides = [1, 1]} : vector<8x384xf32> to vector<8x128xf32>
    %192 = vector.extract_strided_slice %174 {offsets = [0, 256], sizes = [8, 128], strides = [1, 1]} : vector<8x384xf32> to vector<8x128xf32>
    %193 = vector.broadcast %13 : vector<1x128xf32> to vector<8x128xf32>
    %194 = arith.addf %192, %193 : vector<8x128xf32>
    %195 = arith.mulf %182, %194 : vector<8x128xf32>
    %196 = arith.addf %191, %195 : vector<8x128xf32>
    %197 = math.tanh %196 : vector<8x128xf32>
    %198 = arith.subf %169, %197 : vector<8x128xf32>
    %199 = arith.mulf %190, %198 : vector<8x128xf32>
    %200 = arith.addf %197, %199 : vector<8x128xf32>
    %c6_i32 = arith.constant 6 : i32
    %201 = arith.index_cast %c6_i32 : i32 to index
    %c0_47 = arith.constant 0 : index
    %c0_48 = arith.constant 0 : index
    %202 = vector.load %arg10[%201, %c0_47, %c0_48] : memref<8x8x384xf32, #tpu.memory_space<vmem>>, vector<1x8x384xf32>
    %203 = vector.shape_cast %202 : vector<1x8x384xf32> to vector<8x384xf32>
    %204 = arith.truncf %200 : vector<8x128xf32> to vector<8x128xbf16>
    %cst_49 = arith.constant dense<0.000000e+00> : vector<8x384xf32>
    %205 = tpu.matmul %204, %12, %cst_49 {dimension_numbers = #tpu.dot_dimension_numbers<[1], [0], [0], [1], [0, 0, 1, 1], [], []>} : vector<8x128xbf16>, vector<128x384xbf16>, vector<8x384xf32> -> vector<8x384xf32>
    %206 = vector.extract_strided_slice %203 {offsets = [0, 0], sizes = [8, 128], strides = [1, 1]} : vector<8x384xf32> to vector<8x128xf32>
    %207 = vector.extract_strided_slice %205 {offsets = [0, 0], sizes = [8, 128], strides = [1, 1]} : vector<8x384xf32> to vector<8x128xf32>
    %208 = arith.addf %206, %207 : vector<8x128xf32>
    %209 = arith.negf %208 : vector<8x128xf32>
    %210 = math.exp %209 : vector<8x128xf32>
    %cst_50 = arith.constant 1.000000e+00 : f32
    %211 = vector.broadcast %cst_50 : f32 to vector<8x128xf32>
    %212 = arith.addf %211, %210 : vector<8x128xf32>
    %213 = arith.divf %211, %212 : vector<8x128xf32>
    %214 = vector.extract_strided_slice %203 {offsets = [0, 128], sizes = [8, 128], strides = [1, 1]} : vector<8x384xf32> to vector<8x128xf32>
    %215 = vector.extract_strided_slice %205 {offsets = [0, 128], sizes = [8, 128], strides = [1, 1]} : vector<8x384xf32> to vector<8x128xf32>
    %216 = arith.addf %214, %215 : vector<8x128xf32>
    %217 = arith.negf %216 : vector<8x128xf32>
    %218 = math.exp %217 : vector<8x128xf32>
    %cst_51 = arith.constant 1.000000e+00 : f32
    %219 = vector.broadcast %cst_51 : f32 to vector<8x128xf32>
    %220 = arith.addf %219, %218 : vector<8x128xf32>
    %221 = arith.divf %219, %220 : vector<8x128xf32>
    %222 = vector.extract_strided_slice %203 {offsets = [0, 256], sizes = [8, 128], strides = [1, 1]} : vector<8x384xf32> to vector<8x128xf32>
    %223 = vector.extract_strided_slice %205 {offsets = [0, 256], sizes = [8, 128], strides = [1, 1]} : vector<8x384xf32> to vector<8x128xf32>
    %224 = vector.broadcast %13 : vector<1x128xf32> to vector<8x128xf32>
    %225 = arith.addf %223, %224 : vector<8x128xf32>
    %226 = arith.mulf %213, %225 : vector<8x128xf32>
    %227 = arith.addf %222, %226 : vector<8x128xf32>
    %228 = math.tanh %227 : vector<8x128xf32>
    %229 = arith.subf %200, %228 : vector<8x128xf32>
    %230 = arith.mulf %221, %229 : vector<8x128xf32>
    %231 = arith.addf %228, %230 : vector<8x128xf32>
    %c7_i32 = arith.constant 7 : i32
    %232 = arith.index_cast %c7_i32 : i32 to index
    %c0_52 = arith.constant 0 : index
    %c0_53 = arith.constant 0 : index
    %233 = vector.load %arg10[%232, %c0_52, %c0_53] : memref<8x8x384xf32, #tpu.memory_space<vmem>>, vector<1x8x384xf32>
    %234 = vector.shape_cast %233 : vector<1x8x384xf32> to vector<8x384xf32>
    %235 = arith.truncf %231 : vector<8x128xf32> to vector<8x128xbf16>
    %cst_54 = arith.constant dense<0.000000e+00> : vector<8x384xf32>
    %236 = tpu.matmul %235, %12, %cst_54 {dimension_numbers = #tpu.dot_dimension_numbers<[1], [0], [0], [1], [0, 0, 1, 1], [], []>} : vector<8x128xbf16>, vector<128x384xbf16>, vector<8x384xf32> -> vector<8x384xf32>
    %237 = vector.extract_strided_slice %234 {offsets = [0, 0], sizes = [8, 128], strides = [1, 1]} : vector<8x384xf32> to vector<8x128xf32>
    %238 = vector.extract_strided_slice %236 {offsets = [0, 0], sizes = [8, 128], strides = [1, 1]} : vector<8x384xf32> to vector<8x128xf32>
    %239 = arith.addf %237, %238 : vector<8x128xf32>
    %240 = arith.negf %239 : vector<8x128xf32>
    %241 = math.exp %240 : vector<8x128xf32>
    %cst_55 = arith.constant 1.000000e+00 : f32
    %242 = vector.broadcast %cst_55 : f32 to vector<8x128xf32>
    %243 = arith.addf %242, %241 : vector<8x128xf32>
    %244 = arith.divf %242, %243 : vector<8x128xf32>
    %245 = vector.extract_strided_slice %234 {offsets = [0, 128], sizes = [8, 128], strides = [1, 1]} : vector<8x384xf32> to vector<8x128xf32>
    %246 = vector.extract_strided_slice %236 {offsets = [0, 128], sizes = [8, 128], strides = [1, 1]} : vector<8x384xf32> to vector<8x128xf32>
    %247 = arith.addf %245, %246 : vector<8x128xf32>
    %248 = arith.negf %247 : vector<8x128xf32>
    %249 = math.exp %248 : vector<8x128xf32>
    %cst_56 = arith.constant 1.000000e+00 : f32
    %250 = vector.broadcast %cst_56 : f32 to vector<8x128xf32>
    %251 = arith.addf %250, %249 : vector<8x128xf32>
    %252 = arith.divf %250, %251 : vector<8x128xf32>
    %253 = vector.extract_strided_slice %234 {offsets = [0, 256], sizes = [8, 128], strides = [1, 1]} : vector<8x384xf32> to vector<8x128xf32>
    %254 = vector.extract_strided_slice %236 {offsets = [0, 256], sizes = [8, 128], strides = [1, 1]} : vector<8x384xf32> to vector<8x128xf32>
    %255 = vector.broadcast %13 : vector<1x128xf32> to vector<8x128xf32>
    %256 = arith.addf %254, %255 : vector<8x128xf32>
    %257 = arith.mulf %244, %256 : vector<8x128xf32>
    %258 = arith.addf %253, %257 : vector<8x128xf32>
    %259 = math.tanh %258 : vector<8x128xf32>
    %260 = arith.subf %231, %259 : vector<8x128xf32>
    %261 = arith.mulf %252, %260 : vector<8x128xf32>
    %262 = arith.addf %259, %261 : vector<8x128xf32>
    %c8_i32 = arith.constant 8 : i32
    %c0_57 = arith.constant 0 : index
    %c0_58 = arith.constant 0 : index
    %263 = vector.load %arg11[%c0_57, %c0_58] : memref<8x128xf32, #tpu.memory_space<vmem>>, vector<8x128xf32>
    tpu.vector_store %arg11[%c0_57, %c0_58], %262 {strides = array<i32>} : memref<8x128xf32, #tpu.memory_space<vmem>>, vector<8x128xf32>,
    %c0_i32_59 = arith.constant 0 : i32
    %264 = arith.cmpi eq, %arg1, %c0_i32_59 : i32
    %265 = arith.extui %264 : i1 to i32
    %c0_i32_60 = arith.constant 0 : i32
    %266 = arith.cmpi ne, %265, %c0_i32_60 : i32
    scf.if %266 {
      %c0_61 = arith.constant 0 : index
      %c0_62 = arith.constant 0 : index
      %267 = vector.load %arg11[%c0_61, %c0_62] : memref<8x128xf32, #tpu.memory_space<vmem>>, vector<8x128xf32>
      %268 = arith.truncf %267 : vector<8x128xf32> to vector<8x128xbf16>
      %c0_63 = arith.constant 0 : index
      %c0_64 = arith.constant 0 : index
      %269 = vector.load %arg7[%c0_63, %c0_64] : memref<128x32xbf16, #tpu.memory_space<vmem>>, vector<128x32xbf16>
      %cst_65 = arith.constant dense<0.000000e+00> : vector<8x32xf32>
      %270 = tpu.matmul %268, %269, %cst_65 {dimension_numbers = #tpu.dot_dimension_numbers<[1], [0], [0], [1], [0, 0, 1, 1], [], []>} : vector<8x128xbf16>, vector<128x32xbf16>, vector<8x32xf32> -> vector<8x32xf32>
      %c0_66 = arith.constant 0 : index
      %c0_67 = arith.constant 0 : index
      %271 = vector.load %arg8[%c0_66, %c0_67] : memref<1x32xf32, #tpu.memory_space<vmem>>, vector<1x32xf32>
      %272 = vector.broadcast %271 : vector<1x32xf32> to vector<8x32xf32>
      %273 = arith.addf %270, %272 : vector<8x32xf32>
      %c0_68 = arith.constant 0 : index
      %c0_69 = arith.constant 0 : index
      %274 = vector.load %arg9[%c0_68, %c0_69] : memref<8x32xf32, #tpu.memory_space<vmem>>, vector<8x32xf32>
      tpu.vector_store %arg9[%c0_68, %c0_69], %273 {strides = array<i32>} : memref<8x32xf32, #tpu.memory_space<vmem>>, vector<8x32xf32>,
    } else {
    }
    return
  }
  func.func @transform_0(%arg0: i32, %arg1: i32) -> (i32, i32, i32) {
    %c0_i32 = arith.constant 0 : i32
    %c0_i32_0 = arith.constant 0 : i32
    return %arg1, %arg0, %c0_i32 : i32, i32, i32
  }
  func.func @transform_1(%arg0: i32, %arg1: i32) -> (i32, i32) {
    %c0_i32 = arith.constant 0 : i32
    %c0_i32_0 = arith.constant 0 : i32
    %c0_i32_1 = arith.constant 0 : i32
    return %c0_i32, %c0_i32_0 : i32, i32
  }
  func.func @transform_2(%arg0: i32, %arg1: i32) -> (i32, i32) {
    %c0_i32 = arith.constant 0 : i32
    %c0_i32_0 = arith.constant 0 : i32
    %c0_i32_1 = arith.constant 0 : i32
    return %c0_i32, %c0_i32_0 : i32, i32
  }
  func.func @transform_3(%arg0: i32, %arg1: i32) -> (i32, i32) {
    %c0_i32 = arith.constant 0 : i32
    %c0_i32_0 = arith.constant 0 : i32
    %c0_i32_1 = arith.constant 0 : i32
    return %c0_i32, %c0_i32_0 : i32, i32
  }
  func.func @transform_4(%arg0: i32, %arg1: i32) -> (i32, i32) {
    %c0_i32 = arith.constant 0 : i32
    %c0_i32_0 = arith.constant 0 : i32
    %c0_i32_1 = arith.constant 0 : i32
    return %c0_i32, %c0_i32_0 : i32, i32
  }
  func.func @transform_5(%arg0: i32, %arg1: i32) -> (i32, i32) {
    %c0_i32 = arith.constant 0 : i32
    %c0_i32_0 = arith.constant 0 : i32
    %c0_i32_1 = arith.constant 0 : i32
    return %c0_i32, %c0_i32_0 : i32, i32
  }
  func.func @transform_6(%arg0: i32, %arg1: i32) -> (i32, i32) {
    %c0_i32 = arith.constant 0 : i32
    %c0_i32_0 = arith.constant 0 : i32
    %c0_i32_1 = arith.constant 0 : i32
    return %c0_i32, %c0_i32_0 : i32, i32
  }
  func.func @transform_7(%arg0: i32, %arg1: i32) -> (i32, i32) {
    %c0_i32 = arith.constant 0 : i32
    %c0_i32_0 = arith.constant 0 : i32
    return %arg0, %c0_i32 : i32, i32
  }
}

</mosaic_0001>

<llo_original>
// kernel: encoder_forward.1
$region0: #{encoder_forward.1}
  #allocation0 [shape = 'u32[]', space=smem, size = 0x4, offset = 0x4, fixed_abs, tag = 'smem constant byte address 0x4 - core index']
  #allocation1 [shape = 'u32[72,128]{1,0:T(1,128)}', space=vmem, size = 0x9000, scoped, tag = 'internal scratch']
  #allocation2 [shape = 'f32[8,8,384]{2,1,0:T(8,128)}', space=vmem, size = 0x18000, scoped, tag = 'scratch operand']
  #allocation3 [shape = 'f32[8,128]{1,0:T(8,128)}', space=vmem, size = 0x1000, scoped, tag = 'scratch operand']
  %s0 = inlined_call_operand.vmem [shape: bf16[8,8,4], index: 0, kind: input, shape index: {}]
  %s1 = inlined_call_operand.vmem [shape: bf16[4,384], index: 1, kind: input, shape index: {}]
  %s2 = inlined_call_operand.vmem [shape: f32[1,384], index: 2, kind: input, shape index: {}]
  %s3 = inlined_call_operand.vmem [shape: bf16[128,384], index: 3, kind: input, shape index: {}]
  %s4 = inlined_call_operand.vmem [shape: f32[1,128], index: 4, kind: input, shape index: {}]
  %s5 = inlined_call_operand.vmem [shape: bf16[128,32], index: 5, kind: input, shape index: {}]
  %s6 = inlined_call_operand.vmem [shape: f32[1,32], index: 6, kind: input, shape index: {}]
  %s7 = inlined_call_operand.vmem [shape: f32[8,32], index: 7, kind: output, shape index: {}]
  %s8 = sld [smem:[#allocation0]]
  $region46: #{encoder_forward.1} parent=0
    _
  %s10 = ssub.s32 1, %s8
  %s11 = scalar_select 0, %s10, %s8
  // Predicated region
  $region2: #{encoder_forward.1} parent=0 // pred_check
    _
  $region3: #{encoder_forward.1} parent=0 // pred_check_branch
    %13 = sbr.rel (0) target = $region5
  $region4: #{encoder_forward.1} parent=0 // pred_region
    _
  $region5: #{encoder_forward.1} parent=0 // pred_fallthru
    _
  // Predicated region
  $region6: #{encoder_forward.1} parent=0 // pred_check
    _
  $region7: #{encoder_forward.1} parent=0 // pred_check_branch
    %15 = sbr.rel (0) target = $region9
  $region8: #{encoder_forward.1} parent=0 // pred_region
    _
  $region9: #{encoder_forward.1} parent=0 // pred_fallthru
    _
  // Predicated region
  $region10: #{encoder_forward.1} parent=0 // pred_check
    _
  $region11: #{encoder_forward.1} parent=0 // pred_check_branch
    %17 = sbr.rel (0) target = $region13
  $region12: #{encoder_forward.1} parent=0 // pred_region
    _
  $region13: #{encoder_forward.1} parent=0 // pred_fallthru
    _
  // Predicated region
  $region14: #{encoder_forward.1} parent=0 // pred_check
    _
  $region15: #{encoder_forward.1} parent=0 // pred_check_branch
    %19 = sbr.rel (0) target = $region17
  $region16: #{encoder_forward.1} parent=0 // pred_region
    _
  $region17: #{encoder_forward.1} parent=0 // pred_fallthru
    _
  // Predicated region
  $region18: #{encoder_forward.1} parent=0 // pred_check
    _
  $region19: #{encoder_forward.1} parent=0 // pred_check_branch
    %21 = sbr.rel (0) target = $region21
  $region20: #{encoder_forward.1} parent=0 // pred_region
    _
  $region21: #{encoder_forward.1} parent=0 // pred_fallthru
    _
  // Predicated region
  $region22: #{encoder_forward.1} parent=0 // pred_check
    _
  $region23: #{encoder_forward.1} parent=0 // pred_check_branch
    %23 = sbr.rel (0) target = $region25
  $region24: #{encoder_forward.1} parent=0 // pred_region
    _
  $region25: #{encoder_forward.1} parent=0 // pred_fallthru
    _
  // Predicated region
  $region26: #{encoder_forward.1} parent=0 // pred_check
    _
  $region27: #{encoder_forward.1} parent=0 // pred_check_branch
    %25 = sbr.rel (0) target = $region29
  $region28: #{encoder_forward.1} parent=0 // pred_region
    _
  $region29: #{encoder_forward.1} parent=0 // pred_fallthru
    _
  %p27 = scmp.eq.s32.totalorder 0, 0
  // Predicated region
  $region30: #{encoder_forward.1} parent=0 // pred_check
    %p28 = pneg %p27
  $region31: #{encoder_forward.1} parent=0 // pred_check_branch
    %30 = sbr.rel (%p28) target = $region33
  $region32: #{encoder_forward.1} parent=0 // pred_region
    %31 = vst [vmem:[#allocation3] sm:$0xff] 0.0
  $region33: #{encoder_forward.1} parent=0 // pred_fallthru
    _
  %v32 = vld [vmem:[%s0] sm:$0xf]
  %v33 = vld [vmem:[%s0 + $0x4] sm:$0xf]
  %v34 = vld [vmem:[%s0 + $0x8] sm:$0xf]
  %v35 = vld [vmem:[%s0 + $0xc] sm:$0xf]
  %v36 = vld [vmem:[%s0 + $0x10] sm:$0xf]
  %v37 = vld [vmem:[%s0 + $0x14] sm:$0xf]
  %v38 = vld [vmem:[%s0 + $0x18] sm:$0xf]
  %v39 = vld [vmem:[%s0 + $0x1c] sm:$0xf]
  %v40 = vld [vmem:[%s1] sm:$0x3f]
  %v41 = vld [vmem:[%s2] sm:$0x7]
  %v43 = vperm.slane %v41, 0
  %v44 = vperm.slane %v41, 1
  %v45 = vperm.slane %v41, 2
  %v57 = vunpack.c.l.b16 %v32
  %v58 = vunpack.c.l.b16 %v33
  %v59 = vunpack.c.l.b16 %v34
  %v60 = vunpack.c.l.b16 %v35
  %v61 = vunpack.c.l.b16 %v36
  %v62 = vunpack.c.l.b16 %v37
  %v63 = vunpack.c.l.b16 %v38
  %v64 = vunpack.c.l.b16 %v39
  %v65 = vpack.c.b16 %v58, %v57
  %v66 = vpack.c.b16 %v60, %v59
  %v67 = vpack.c.b16 %v62, %v61
  %v68 = vpack.c.b16 %v64, %v63
  %70 = vst [vmem:[#allocation1] ss:$4 sm:$0xff] %v40
  %v71 = vld.sshfl [vmem:[#allocation1] sm:$0xff pattern:$0x73625140]
  %v72 = vld.sshfl [vmem:[#allocation1 + $0x8] sm:$0xff pattern:$0x73625140]
  %v73 = vld.sshfl [vmem:[#allocation1 + $0x10] sm:$0xff pattern:$0x73625140]
  %vm74 = vcmask 31744
  %v76 = vsel %vm74, %v65, 0
  %v79 = vsel %vm74, %v66, 0
  %v82 = vsel %vm74, %v67, 0
  %v85 = vsel %vm74, %v68, 0
  %vm87 = vcmask 1041408
  %v88 = vsel %vm87, %v71, 0
  %v90 = vsel %vm87, %v72, 0
  %v92 = vsel %vm87, %v73, 0
  %94 = vmatpush.bf16.msra.mxu0 0
  %95 = vmatpush.bf16.msra.mxu0 0
  %96 = vmatpush.bf16.msra.mxu0 0
  %97 = vmatpush.bf16.msra.mxu0 0
  %98 = vmatpush.bf16.msra.mxu0 0
  %99 = vmatpush.bf16.msra.mxu0 0
  %100 = vmatpush.bf16.msra.mxu0 0
  %101 = vmatpush.bf16.msra.mxu0 %v88
  %102 = vmatmul.bf16.gmra.mxu0 %v76
  %v103 = vpop.f32.mrf.mxu0
  %v104 = vadd.f32 %v43, %v103
  %v105 = vpop.f32.mrf.mxu0
  %v106 = vadd.f32 %v43, %v105
  %107 = vmatmul.bf16.gmra.mxu0 %v79
  %v108 = vpop.f32.mrf.mxu0
  %v109 = vadd.f32 %v43, %v108
  %v110 = vpop.f32.mrf.mxu0
  %v111 = vadd.f32 %v43, %v110
  %112 = vmatmul.bf16.gmra.mxu0 %v82
  %v113 = vpop.f32.mrf.mxu0
  %v114 = vadd.f32 %v43, %v113
  %v115 = vpop.f32.mrf.mxu0
  %v116 = vadd.f32 %v43, %v115
  %117 = vmatmul.bf16.gmra.mxu0 %v85
  %v118 = vpop.f32.mrf.mxu0
  %v119 = vadd.f32 %v43, %v118
  %v120 = vpop.f32.mrf.mxu0
  %v121 = vadd.f32 %v43, %v120
  %122 = vdwg.mxu0
  %123 = vmatpush.bf16.msra.mxu0 0
  %124 = vmatpush.bf16.msra.mxu0 0
  %125 = vmatpush.bf16.msra.mxu0 0
  %126 = vmatpush.bf16.msra.mxu0 0
  %127 = vmatpush.bf16.msra.mxu0 0
  %128 = vmatpush.bf16.msra.mxu0 0
  %129 = vmatpush.bf16.msra.mxu0 0
  %130 = vmatpush.bf16.msra.mxu0 %v90
  %131 = vmatmul.bf16.gmra.mxu0 %v76
  %v132 = vpop.f32.mrf.mxu0
  %v133 = vadd.f32 %v44, %v132
  %v134 = vpop.f32.mrf.mxu0
  %v135 = vadd.f32 %v44, %v134
  %136 = vmatmul.bf16.gmra.mxu0 %v79
  %v137 = vpop.f32.mrf.mxu0
  %v138 = vadd.f32 %v44, %v137
  %v139 = vpop.f32.mrf.mxu0
  %v140 = vadd.f32 %v44, %v139
  %141 = vmatmul.bf16.gmra.mxu0 %v82
  %v142 = vpop.f32.mrf.mxu0
  %v143 = vadd.f32 %v44, %v142
  %v144 = vpop.f32.mrf.mxu0
  %v145 = vadd.f32 %v44, %v144
  %146 = vmatmul.bf16.gmra.mxu0 %v85
  %v147 = vpop.f32.mrf.mxu0
  %v148 = vadd.f32 %v44, %v147
  %v149 = vpop.f32.mrf.mxu0
  %v150 = vadd.f32 %v44, %v149
  %151 = vdwg.mxu0
  %152 = vmatpush.bf16.msra.mxu0 0
  %153 = vmatpush.bf16.msra.mxu0 0
  %154 = vmatpush.bf16.msra.mxu0 0
  %155 = vmatpush.bf16.msra.mxu0 0
  %156 = vmatpush.bf16.msra.mxu0 0
  %157 = vmatpush.bf16.msra.mxu0 0
  %158 = vmatpush.bf16.msra.mxu0 0
  %159 = vmatpush.bf16.msra.mxu0 %v92
  %160 = vmatmul.bf16.gmra.mxu0 %v76
  %v161 = vpop.f32.mrf.mxu0
  %v162 = vadd.f32 %v45, %v161
  %v163 = vpop.f32.mrf.mxu0
  %v164 = vadd.f32 %v45, %v163
  %165 = vmatmul.bf16.gmra.mxu0 %v79
  %v166 = vpop.f32.mrf.mxu0
  %v167 = vadd.f32 %v45, %v166
  %v168 = vpop.f32.mrf.mxu0
  %v169 = vadd.f32 %v45, %v168
  %170 = vmatmul.bf16.gmra.mxu0 %v82
  %v171 = vpop.f32.mrf.mxu0
  %v172 = vadd.f32 %v45, %v171
  %v173 = vpop.f32.mrf.mxu0
  %v174 = vadd.f32 %v45, %v173
  %175 = vmatmul.bf16.gmra.mxu0 %v85
  %v176 = vpop.f32.mrf.mxu0
  %v177 = vadd.f32 %v45, %v176
  %v178 = vpop.f32.mrf.mxu0
  %v179 = vadd.f32 %v45, %v178
  %180 = vdwg.mxu0
  %181 = vst [vmem:[#allocation2] sm:$0xff] %v104
  %182 = vst [vmem:[#allocation2 + $0x8] sm:$0xff] %v133
  %183 = vst [vmem:[#allocation2 + $0x10] sm:$0xff] %v162
  %184 = vst [vmem:[#allocation2 + $0x18] sm:$0xff] %v106
  %185 = vst [vmem:[#allocation2 + $0x20] sm:$0xff] %v135
  %186 = vst [vmem:[#allocation2 + $0x28] sm:$0xff] %v164
  %187 = vst [vmem:[#allocation2 + $0x30] sm:$0xff] %v109
  %188 = vst [vmem:[#allocation2 + $0x38] sm:$0xff] %v138
  %189 = vst [vmem:[#allocation2 + $0x40] sm:$0xff] %v167
  %190 = vst [vmem:[#allocation2 + $0x48] sm:$0xff] %v111
  %191 = vst [vmem:[#allocation2 + $0x50] sm:$0xff] %v140
  %192 = vst [vmem:[#allocation2 + $0x58] sm:$0xff] %v169
  %193 = vst [vmem:[#allocation2 + $0x60] sm:$0xff] %v114
  %194 = vst [vmem:[#allocation2 + $0x68] sm:$0xff] %v143
  %195 = vst [vmem:[#allocation2 + $0x70] sm:$0xff] %v172
  %196 = vst [vmem:[#allocation2 + $0x78] sm:$0xff] %v116
  %197 = vst [vmem:[#allocation2 + $0x80] sm:$0xff] %v145
  %198 = vst [vmem:[#allocation2 + $0x88] sm:$0xff] %v174
  %199 = vst [vmem:[#allocation2 + $0x90] sm:$0xff] %v119
  %200 = vst [vmem:[#allocation2 + $0x98] sm:$0xff] %v148
  %201 = vst [vmem:[#allocation2 + $0xa0] sm:$0xff] %v177
  %202 = vst [vmem:[#allocation2 + $0xa8] sm:$0xff] %v121
  %203 = vst [vmem:[#allocation2 + $0xb0] sm:$0xff] %v150
  %204 = vst [vmem:[#allocation2 + $0xb8] sm:$0xff] %v179
  %v205 = vld [vmem:[%s3] sm:$0xff]
  %v206 = vld [vmem:[%s3 + $0x8] sm:$0xf]
  %v207 = vld [vmem:[%s3 + $0xc] sm:$0xff]
  %v208 = vld [vmem:[%s3 + $0x14] sm:$0xf]
  %v209 = vld [vmem:[%s3 + $0x18] sm:$0xff]
  %v210 = vld [vmem:[%s3 + $0x20] sm:$0xf]
  %v211 = vld [vmem:[%s3 + $0x24] sm:$0xff]
  %v212 = vld [vmem:[%s3 + $0x2c] sm:$0xf]
  %v213 = vld [vmem:[%s3 + $0x30] sm:$0xff]
  %v214 = vld [vmem:[%s3 + $0x38] sm:$0xf]
  %v215 = vld [vmem:[%s3 + $0x3c] sm:$0xff]
  %v216 = vld [vmem:[%s3 + $0x44] sm:$0xf]
  %v217 = vld [vmem:[%s3 + $0x48] sm:$0xff]
  %v218 = vld [vmem:[%s3 + $0x50] sm:$0xf]
  %v219 = vld [vmem:[%s3 + $0x54] sm:$0xff]
  %v220 = vld [vmem:[%s3 + $0x5c] sm:$0xf]
  %v221 = vld [vmem:[%s3 + $0x60] sm:$0xff]
  %v222 = vld [vmem:[%s3 + $0x68] sm:$0xf]
  %v223 = vld [vmem:[%s3 + $0x6c] sm:$0xff]
  %v224 = vld [vmem:[%s3 + $0x74] sm:$0xf]
  %v225 = vld [vmem:[%s3 + $0x78] sm:$0xff]
  %v226 = vld [vmem:[%s3 + $0x80] sm:$0xf]
  %v227 = vld [vmem:[%s3 + $0x84] sm:$0xff]
  %v228 = vld [vmem:[%s3 + $0x8c] sm:$0xf]
  %v229 = vld [vmem:[%s3 + $0x90] sm:$0xff]
  %v230 = vld [vmem:[%s3 + $0x98] sm:$0xf]
  %v231 = vld [vmem:[%s3 + $0x9c] sm:$0xff]
  %v232 = vld [vmem:[%s3 + $0xa4] sm:$0xf]
  %v233 = vld [vmem:[%s3 + $0xa8] sm:$0xff]
  %v234 = vld [vmem:[%s3 + $0xb0] sm:$0xf]
  %v235 = vld [vmem:[%s3 + $0xb4] sm:$0xff]
  %v236 = vld [vmem:[%s3 + $0xbc] sm:$0xf]
  %v237 = vld [vmem:[%s4] sm:$0x1]
  %v238 = vld [vmem:[#allocation3] sm:$0xff]
  %v239 = vld [vmem:[#allocation2] sm:$0xff]
  %v240 = vld [vmem:[#allocation2 + $0x8] sm:$0xff]
  %v241 = vld [vmem:[#allocation2 + $0x10] sm:$0xff]
  %v242 = vpack.c.bf16 %v238, %v238
  %v275 = vunpack.c.l.b16 %v205
  %v276 = vunpack.c.h.b16 %v205
  %v277 = vunpack.c.l.b16 %v206
  %v278 = vunpack.c.l.b16 %v207
  %v279 = vunpack.c.h.b16 %v207
  %v280 = vunpack.c.l.b16 %v208
  %v281 = vunpack.c.l.b16 %v209
  %v282 = vunpack.c.h.b16 %v209
  %v283 = vunpack.c.l.b16 %v210
  %v284 = vunpack.c.l.b16 %v211
  %v285 = vunpack.c.h.b16 %v211
  %v286 = vunpack.c.l.b16 %v212
  %v287 = vunpack.c.l.b16 %v213
  %v288 = vunpack.c.h.b16 %v213
  %v289 = vunpack.c.l.b16 %v214
  %v290 = vunpack.c.l.b16 %v215
  %v291 = vunpack.c.h.b16 %v215
  %v292 = vunpack.c.l.b16 %v216
  %v293 = vunpack.c.l.b16 %v217
  %v294 = vunpack.c.h.b16 %v217
  %v295 = vunpack.c.l.b16 %v218
  %v296 = vunpack.c.l.b16 %v219
  %v297 = vunpack.c.h.b16 %v219
  %v298 = vunpack.c.l.b16 %v220
  %v299 = vunpack.c.l.b16 %v221
  %v300 = vunpack.c.h.b16 %v221
  %v301 = vunpack.c.l.b16 %v222
  %v302 = vunpack.c.l.b16 %v223
  %v303 = vunpack.c.h.b16 %v223
  %v304 = vunpack.c.l.b16 %v224
  %v305 = vunpack.c.l.b16 %v225
  %v306 = vunpack.c.h.b16 %v225
  %v307 = vunpack.c.l.b16 %v226
  %v308 = vunpack.c.l.b16 %v227
  %v309 = vunpack.c.h.b16 %v227
  %v310 = vunpack.c.l.b16 %v228
  %v311 = vunpack.c.l.b16 %v229
  %v312 = vunpack.c.h.b16 %v229
  %v313 = vunpack.c.l.b16 %v230
  %v314 = vunpack.c.l.b16 %v231
  %v315 = vunpack.c.h.b16 %v231
  %v316 = vunpack.c.l.b16 %v232
  %v317 = vunpack.c.l.b16 %v233
  %v318 = vunpack.c.h.b16 %v233
  %v319 = vunpack.c.l.b16 %v234
  %v320 = vunpack.c.l.b16 %v235
  %v321 = vunpack.c.h.b16 %v235
  %v322 = vunpack.c.l.b16 %v236
  %v323 = vpack.c.b16 %v278, %v275
  %v324 = vpack.c.b16 %v279, %v276
  %v325 = vpack.c.b16 %v280, %v277
  %v326 = vpack.c.b16 %v284, %v281
  %v327 = vpack.c.b16 %v285, %v282
  %v328 = vpack.c.b16 %v286, %v283
  %v329 = vpack.c.b16 %v290, %v287
  %v330 = vpack.c.b16 %v291, %v288
  %v331 = vpack.c.b16 %v292, %v289
  %v332 = vpack.c.b16 %v296, %v293
  %v333 = vpack.c.b16 %v297, %v294
  %v334 = vpack.c.b16 %v298, %v295
  %v335 = vpack.c.b16 %v302, %v299
  %v336 = vpack.c.b16 %v303, %v300
  %v337 = vpack.c.b16 %v304, %v301
  %v338 = vpack.c.b16 %v308, %v305
  %v339 = vpack.c.b16 %v309, %v306
  %v340 = vpack.c.b16 %v310, %v307
  %v341 = vpack.c.b16 %v314, %v311
  %v342 = vpack.c.b16 %v315, %v312
  %v343 = vpack.c.b16 %v316, %v313
  %v344 = vpack.c.b16 %v320, %v317
  %v345 = vpack.c.b16 %v321, %v318
  %v346 = vpack.c.b16 %v322, %v319
  %371 = vmatpush.bf16.msra.mxu0 %v344
  %372 = vmatpush.bf16.msra.mxu0 %v341
  %373 = vmatpush.bf16.msra.mxu0 %v338
  %374 = vmatpush.bf16.msra.mxu0 %v335
  %375 = vmatpush.bf16.msra.mxu0 %v332
  %376 = vmatpush.bf16.msra.mxu0 %v329
  %377 = vmatpush.bf16.msra.mxu0 %v326
  %378 = vmatpush.bf16.msra.mxu0 %v323
  %379 = vmatmul.bf16.gmra.mxu0 %v242
  %v380 = vpop.f32.mrf.mxu0
  %v381 = vadd.f32 0.0, %v380
  %v382 = vpop.f32.mrf.mxu0
  %383 = vdwg.mxu0
  %384 = vmatpush.bf16.msra.mxu0 %v345
  %385 = vmatpush.bf16.msra.mxu0 %v342
  %386 = vmatpush.bf16.msra.mxu0 %v339
  %387 = vmatpush.bf16.msra.mxu0 %v336
  %388 = vmatpush.bf16.msra.mxu0 %v333
  %389 = vmatpush.bf16.msra.mxu0 %v330
  %390 = vmatpush.bf16.msra.mxu0 %v327
  %391 = vmatpush.bf16.msra.mxu0 %v324
  %392 = vmatmul.bf16.gmra.mxu0 %v242
  %v393 = vpop.f32.mrf.mxu0
  %v394 = vadd.f32 0.0, %v393
  %v395 = vpop.f32.mrf.mxu0
  %396 = vdwg.mxu0
  %397 = vmatpush.bf16.msra.mxu0 %v346
  %398 = vmatpush.bf16.msra.mxu0 %v343
  %399 = vmatpush.bf16.msra.mxu0 %v340
  %400 = vmatpush.bf16.msra.mxu0 %v337
  %401 = vmatpush.bf16.msra.mxu0 %v334
  %402 = vmatpush.bf16.msra.mxu0 %v331
  %403 = vmatpush.bf16.msra.mxu0 %v328
  %404 = vmatpush.bf16.msra.mxu0 %v325
  %405 = vmatmul.bf16.gmra.mxu0 %v242
  %v406 = vpop.f32.mrf.mxu0
  %v407 = vadd.f32 0.0, %v406
  %v408 = vpop.f32.mrf.mxu0
  %409 = vdwg.mxu0
  %v410 = vadd.f32 %v239, %v381
  %v411 = vxor.u32 %v410, 2147483648
  %v412 = vmul.f32 %v411, 1.442695
  %v413 = vpow.pop %v412
  %v414 = vadd.f32 %v413, 1.0
  %v415 = vrcp.pop %v414
  %v416 = vmul.f32 %v414, %v415
  %v417 = vsub.f32 1.0, %v416
  %v418 = vmul.f32 %v415, %v417
  %v419 = vadd.f32 %v415, %v418
  %vm420 = vweird.f32 %v414
  %vm421 = vweird.f32 %v415
  %vm422 = vmor %vm420, %vm421
  %v423 = vsel %vm422, %v415, %v419
  %v424 = vand.u32 2147483647, %v414
  %vm425 = vcmp.eq.f32.partialorder %v424, 8.507059e+37
  %v426 = vand.u32 %v414, 2147483648
  %v427 = vor.u32 1.1754944e-38, %v426
  %v428 = vsel %vm425, %v427, %v423
  %v429 = vmul.f32 1.0, %v428
  %v430 = vadd.f32 %v240, %v394
  %v431 = vxor.u32 %v430, 2147483648
  %v432 = vmul.f32 %v431, 1.442695
  %v433 = vpow.pop %v432
  %v434 = vadd.f32 %v433, 1.0
  %v435 = vrcp.pop %v434
  %v436 = vmul.f32 %v434, %v435
  %v437 = vsub.f32 1.0, %v436
  %v438 = vmul.f32 %v435, %v437
  %v439 = vadd.f32 %v435, %v438
  %vm440 = vweird.f32 %v434
  %vm441 = vweird.f32 %v435
  %vm442 = vmor %vm440, %vm441
  %v443 = vsel %vm442, %v435, %v439
  %v444 = vand.u32 2147483647, %v434
  %vm445 = vcmp.eq.f32.partialorder %v444, 8.507059e+37
  %v446 = vand.u32 %v434, 2147483648
  %v447 = vor.u32 1.1754944e-38, %v446
  %v448 = vsel %vm445, %v447, %v443
  %v449 = vmul.f32 1.0, %v448
  %v451 = vperm.slane %v237, 0
  %v453 = vadd.f32 %v407, %v451
  %v454 = vmul.f32 %v429, %v453
  %v455 = vadd.f32 %v241, %v454
  %v456 = vtanh.pop %v455
  %v457 = vsub.f32 %v238, %v456
  %v458 = vmul.f32 %v449, %v457
  %v459 = vadd.f32 %v456, %v458
  %s460 = scalar_lea.vmem [#allocation2], 24
  %v461 = vld [vmem:[%s460] sm:$0xff]
  %v462 = vld [vmem:[%s460 + $0x8] sm:$0xff]
  %v463 = vld [vmem:[%s460 + $0x10] sm:$0xff]
  %v464 = vpack.c.bf16 %v459, %v459
  %465 = vmatpush.bf16.msra.mxu0 %v344
  %466 = vmatpush.bf16.msra.mxu0 %v341
  %467 = vmatpush.bf16.msra.mxu0 %v338
  %468 = vmatpush.bf16.msra.mxu0 %v335
  %469 = vmatpush.bf16.msra.mxu0 %v332
  %470 = vmatpush.bf16.msra.mxu0 %v329
  %471 = vmatpush.bf16.msra.mxu0 %v326
  %472 = vmatpush.bf16.msra.mxu0 %v323
  %473 = vmatmul.bf16.gmra.mxu0 %v464
  %v474 = vpop.f32.mrf.mxu0
  %v475 = vadd.f32 0.0, %v474
  %v476 = vpop.f32.mrf.mxu0
  %477 = vdwg.mxu0
  %478 = vmatpush.bf16.msra.mxu0 %v345
  %479 = vmatpush.bf16.msra.mxu0 %v342
  %480 = vmatpush.bf16.msra.mxu0 %v339
  %481 = vmatpush.bf16.msra.mxu0 %v336
  %482 = vmatpush.bf16.msra.mxu0 %v333
  %483 = vmatpush.bf16.msra.mxu0 %v330
  %484 = vmatpush.bf16.msra.mxu0 %v327
  %485 = vmatpush.bf16.msra.mxu0 %v324
  %486 = vmatmul.bf16.gmra.mxu0 %v464
  %v487 = vpop.f32.mrf.mxu0
  %v488 = vadd.f32 0.0, %v487
  %v489 = vpop.f32.mrf.mxu0
  %490 = vdwg.mxu0
  %491 = vmatpush.bf16.msra.mxu0 %v346
  %492 = vmatpush.bf16.msra.mxu0 %v343
  %493 = vmatpush.bf16.msra.mxu0 %v340
  %494 = vmatpush.bf16.msra.mxu0 %v337
  %495 = vmatpush.bf16.msra.mxu0 %v334
  %496 = vmatpush.bf16.msra.mxu0 %v331
  %497 = vmatpush.bf16.msra.mxu0 %v328
  %498 = vmatpush.bf16.msra.mxu0 %v325
  %499 = vmatmul.bf16.gmra.mxu0 %v464
  %v500 = vpop.f32.mrf.mxu0
  %v501 = vadd.f32 0.0, %v500
  %v502 = vpop.f32.mrf.mxu0
  %503 = vdwg.mxu0
  %v504 = vadd.f32 %v461, %v475
  %v505 = vxor.u32 %v504, 2147483648
  %v506 = vmul.f32 %v505, 1.442695
  %v507 = vpow.pop %v506
  %v508 = vadd.f32 %v507, 1.0
  %v509 = vrcp.pop %v508
  %v510 = vmul.f32 %v508, %v509
  %v511 = vsub.f32 1.0, %v510
  %v512 = vmul.f32 %v509, %v511
  %v513 = vadd.f32 %v509, %v512
  %vm514 = vweird.f32 %v508
  %vm515 = vweird.f32 %v509
  %vm516 = vmor %vm514, %vm515
  %v517 = vsel %vm516, %v509, %v513
  %v518 = vand.u32 2147483647, %v508
  %vm519 = vcmp.eq.f32.partialorder %v518, 8.507059e+37
  %v520 = vand.u32 %v508, 2147483648
  %v521 = vor.u32 1.1754944e-38, %v520
  %v522 = vsel %vm519, %v521, %v517
  %v523 = vmul.f32 1.0, %v522
  %v524 = vadd.f32 %v462, %v488
  %v525 = vxor.u32 %v524, 2147483648
  %v526 = vmul.f32 %v525, 1.442695
  %v527 = vpow.pop %v526
  %v528 = vadd.f32 %v527, 1.0
  %v529 = vrcp.pop %v528
  %v530 = vmul.f32 %v528, %v529
  %v531 = vsub.f32 1.0, %v530
  %v532 = vmul.f32 %v529, %v531
  %v533 = vadd.f32 %v529, %v532
  %vm534 = vweird.f32 %v528
  %vm535 = vweird.f32 %v529
  %vm536 = vmor %vm534, %vm535
  %v537 = vsel %vm536, %v529, %v533
  %v538 = vand.u32 2147483647, %v528
  %vm539 = vcmp.eq.f32.partialorder %v538, 8.507059e+37
  %v540 = vand.u32 %v528, 2147483648
  %v541 = vor.u32 1.1754944e-38, %v540
  %v542 = vsel %vm539, %v541, %v537
  %v543 = vmul.f32 1.0, %v542
  %v544 = vadd.f32 %v501, %v451
  %v545 = vmul.f32 %v523, %v544
  %v546 = vadd.f32 %v463, %v545
  %v547 = vtanh.pop %v546
  %v548 = vsub.f32 %v459, %v547
  %v549 = vmul.f32 %v543, %v548
  %v550 = vadd.f32 %v547, %v549
  %s551 = scalar_lea.vmem [#allocation2], 48
  %v552 = vld [vmem:[%s551] sm:$0xff]
  %v553 = vld [vmem:[%s551 + $0x8] sm:$0xff]
  %v554 = vld [vmem:[%s551 + $0x10] sm:$0xff]
  %v555 = vpack.c.bf16 %v550, %v550
  %556 = vmatpush.bf16.msra.mxu0 %v344
  %557 = vmatpush.bf16.msra.mxu0 %v341
  %558 = vmatpush.bf16.msra.mxu0 %v338
  %559 = vmatpush.bf16.msra.mxu0 %v335
  %560 = vmatpush.bf16.msra.mxu0 %v332
  %561 = vmatpush.bf16.msra.mxu0 %v329
  %562 = vmatpush.bf16.msra.mxu0 %v326
  %563 = vmatpush.bf16.msra.mxu0 %v323
  %564 = vmatmul.bf16.gmra.mxu0 %v555
  %v565 = vpop.f32.mrf.mxu0
  %v566 = vadd.f32 0.0, %v565
  %v567 = vpop.f32.mrf.mxu0
  %568 = vdwg.mxu0
  %569 = vmatpush.bf16.msra.mxu0 %v345
  %570 = vmatpush.bf16.msra.mxu0 %v342
  %571 = vmatpush.bf16.msra.mxu0 %v339
  %572 = vmatpush.bf16.msra.mxu0 %v336
  %573 = vmatpush.bf16.msra.mxu0 %v333
  %574 = vmatpush.bf16.msra.mxu0 %v330
  %575 = vmatpush.bf16.msra.mxu0 %v327
  %576 = vmatpush.bf16.msra.mxu0 %v324
  %577 = vmatmul.bf16.gmra.mxu0 %v555
  %v578 = vpop.f32.mrf.mxu0
  %v579 = vadd.f32 0.0, %v578
  %v580 = vpop.f32.mrf.mxu0
  %581 = vdwg.mxu0
  %582 = vmatpush.bf16.msra.mxu0 %v346
  %583 = vmatpush.bf16.msra.mxu0 %v343
  %584 = vmatpush.bf16.msra.mxu0 %v340
  %585 = vmatpush.bf16.msra.mxu0 %v337
  %586 = vmatpush.bf16.msra.mxu0 %v334
  %587 = vmatpush.bf16.msra.mxu0 %v331
  %588 = vmatpush.bf16.msra.mxu0 %v328
  %589 = vmatpush.bf16.msra.mxu0 %v325
  %590 = vmatmul.bf16.gmra.mxu0 %v555
  %v591 = vpop.f32.mrf.mxu0
  %v592 = vadd.f32 0.0, %v591
  %v593 = vpop.f32.mrf.mxu0
  %594 = vdwg.mxu0
  %v595 = vadd.f32 %v552, %v566
  %v596 = vxor.u32 %v595, 2147483648
  %v597 = vmul.f32 %v596, 1.442695
  %v598 = vpow.pop %v597
  %v599 = vadd.f32 %v598, 1.0
  %v600 = vrcp.pop %v599
  %v601 = vmul.f32 %v599, %v600
  %v602 = vsub.f32 1.0, %v601
  %v603 = vmul.f32 %v600, %v602
  %v604 = vadd.f32 %v600, %v603
  %vm605 = vweird.f32 %v599
  %vm606 = vweird.f32 %v600
  %vm607 = vmor %vm605, %vm606
  %v608 = vsel %vm607, %v600, %v604
  %v609 = vand.u32 2147483647, %v599
  %vm610 = vcmp.eq.f32.partialorder %v609, 8.507059e+37
  %v611 = vand.u32 %v599, 2147483648
  %v612 = vor.u32 1.1754944e-38, %v611
  %v613 = vsel %vm610, %v612, %v608
  %v614 = vmul.f32 1.0, %v613
  %v615 = vadd.f32 %v553, %v579
  %v616 = vxor.u32 %v615, 2147483648
  %v617 = vmul.f32 %v616, 1.442695
  %v618 = vpow.pop %v617
  %v619 = vadd.f32 %v618, 1.0
  %v620 = vrcp.pop %v619
  %v621 = vmul.f32 %v619, %v620
  %v622 = vsub.f32 1.0, %v621
  %v623 = vmul.f32 %v620, %v622
  %v624 = vadd.f32 %v620, %v623
  %vm625 = vweird.f32 %v619
  %vm626 = vweird.f32 %v620
  %vm627 = vmor %vm625, %vm626
  %v628 = vsel %vm627, %v620, %v624
  %v629 = vand.u32 2147483647, %v619
  %vm630 = vcmp.eq.f32.partialorder %v629, 8.507059e+37
  %v631 = vand.u32 %v619, 2147483648
  %v632 = vor.u32 1.1754944e-38, %v631
  %v633 = vsel %vm630, %v632, %v628
  %v634 = vmul.f32 1.0, %v633
  %v635 = vadd.f32 %v592, %v451
  %v636 = vmul.f32 %v614, %v635
  %v637 = vadd.f32 %v554, %v636
  %v638 = vtanh.pop %v637
  %v639 = vsub.f32 %v550, %v638
  %v640 = vmul.f32 %v634, %v639
  %v641 = vadd.f32 %v638, %v640
  %s642 = scalar_lea.vmem [#allocation2], 72
  %v643 = vld [vmem:[%s642] sm:$0xff]
  %v644 = vld [vmem:[%s642 + $0x8] sm:$0xff]
  %v645 = vld [vmem:[%s642 + $0x10] sm:$0xff]
  %v646 = vpack.c.bf16 %v641, %v641
  %647 = vmatpush.bf16.msra.mxu0 %v344
  %648 = vmatpush.bf16.msra.mxu0 %v341
  %649 = vmatpush.bf16.msra.mxu0 %v338
  %650 = vmatpush.bf16.msra.mxu0 %v335
  %651 = vmatpush.bf16.msra.mxu0 %v332
  %652 = vmatpush.bf16.msra.mxu0 %v329
  %653 = vmatpush.bf16.msra.mxu0 %v326
  %654 = vmatpush.bf16.msra.mxu0 %v323
  %655 = vmatmul.bf16.gmra.mxu0 %v646
  %v656 = vpop.f32.mrf.mxu0
  %v657 = vadd.f32 0.0, %v656
  %v658 = vpop.f32.mrf.mxu0
  %659 = vdwg.mxu0
  %660 = vmatpush.bf16.msra.mxu0 %v345
  %661 = vmatpush.bf16.msra.mxu0 %v342
  %662 = vmatpush.bf16.msra.mxu0 %v339
  %663 = vmatpush.bf16.msra.mxu0 %v336
  %664 = vmatpush.bf16.msra.mxu0 %v333
  %665 = vmatpush.bf16.msra.mxu0 %v330
  %666 = vmatpush.bf16.msra.mxu0 %v327
  %667 = vmatpush.bf16.msra.mxu0 %v324
  %668 = vmatmul.bf16.gmra.mxu0 %v646
  %v669 = vpop.f32.mrf.mxu0
  %v670 = vadd.f32 0.0, %v669
  %v671 = vpop.f32.mrf.mxu0
  %672 = vdwg.mxu0
  %673 = vmatpush.bf16.msra.mxu0 %v346
  %674 = vmatpush.bf16.msra.mxu0 %v343
  %675 = vmatpush.bf16.msra.mxu0 %v340
  %676 = vmatpush.bf16.msra.mxu0 %v337
  %677 = vmatpush.bf16.msra.mxu0 %v334
  %678 = vmatpush.bf16.msra.mxu0 %v331
  %679 = vmatpush.bf16.msra.mxu0 %v328
  %680 = vmatpush.bf16.msra.mxu0 %v325
  %681 = vmatmul.bf16.gmra.mxu0 %v646
  %v682 = vpop.f32.mrf.mxu0
  %v683 = vadd.f32 0.0, %v682
  %v684 = vpop.f32.mrf.mxu0
  %685 = vdwg.mxu0
  %v686 = vadd.f32 %v643, %v657
  %v687 = vxor.u32 %v686, 2147483648
  %v688 = vmul.f32 %v687, 1.442695
  %v689 = vpow.pop %v688
  %v690 = vadd.f32 %v689, 1.0
  %v691 = vrcp.pop %v690
  %v692 = vmul.f32 %v690, %v691
  %v693 = vsub.f32 1.0, %v692
  %v694 = vmul.f32 %v691, %v693
  %v695 = vadd.f32 %v691, %v694
  %vm696 = vweird.f32 %v690
  %vm697 = vweird.f32 %v691
  %vm698 = vmor %vm696, %vm697
  %v699 = vsel %vm698, %v691, %v695
  %v700 = vand.u32 2147483647, %v690
  %vm701 = vcmp.eq.f32.partialorder %v700, 8.507059e+37
  %v702 = vand.u32 %v690, 2147483648
  %v703 = vor.u32 1.1754944e-38, %v702
  %v704 = vsel %vm701, %v703, %v699
  %v705 = vmul.f32 1.0, %v704
  %v706 = vadd.f32 %v644, %v670
  %v707 = vxor.u32 %v706, 2147483648
  %v708 = vmul.f32 %v707, 1.442695
  %v709 = vpow.pop %v708
  %v710 = vadd.f32 %v709, 1.0
  %v711 = vrcp.pop %v710
  %v712 = vmul.f32 %v710, %v711
  %v713 = vsub.f32 1.0, %v712
  %v714 = vmul.f32 %v711, %v713
  %v715 = vadd.f32 %v711, %v714
  %vm716 = vweird.f32 %v710
  %vm717 = vweird.f32 %v711
  %vm718 = vmor %vm716, %vm717
  %v719 = vsel %vm718, %v711, %v715
  %v720 = vand.u32 2147483647, %v710
  %vm721 = vcmp.eq.f32.partialorder %v720, 8.507059e+37
  %v722 = vand.u32 %v710, 2147483648
  %v723 = vor.u32 1.1754944e-38, %v722
  %v724 = vsel %vm721, %v723, %v719
  %v725 = vmul.f32 1.0, %v724
  %v726 = vadd.f32 %v683, %v451
  %v727 = vmul.f32 %v705, %v726
  %v728 = vadd.f32 %v645, %v727
  %v729 = vtanh.pop %v728
  %v730 = vsub.f32 %v641, %v729
  %v731 = vmul.f32 %v725, %v730
  %v732 = vadd.f32 %v729, %v731
  %s733 = scalar_lea.vmem [#allocation2], 96
  %v734 = vld [vmem:[%s733] sm:$0xff]
  %v735 = vld [vmem:[%s733 + $0x8] sm:$0xff]
  %v736 = vld [vmem:[%s733 + $0x10] sm:$0xff]
  %v737 = vpack.c.bf16 %v732, %v732
  %738 = vmatpush.bf16.msra.mxu0 %v344
  %739 = vmatpush.bf16.msra.mxu0 %v341
  %740 = vmatpush.bf16.msra.mxu0 %v338
  %741 = vmatpush.bf16.msra.mxu0 %v335
  %742 = vmatpush.bf16.msra.mxu0 %v332
  %743 = vmatpush.bf16.msra.mxu0 %v329
  %744 = vmatpush.bf16.msra.mxu0 %v326
  %745 = vmatpush.bf16.msra.mxu0 %v323
  %746 = vmatmul.bf16.gmra.mxu0 %v737
  %v747 = vpop.f32.mrf.mxu0
  %v748 = vadd.f32 0.0, %v747
  %v749 = vpop.f32.mrf.mxu0
  %750 = vdwg.mxu0
  %751 = vmatpush.bf16.msra.mxu0 %v345
  %752 = vmatpush.bf16.msra.mxu0 %v342
  %753 = vmatpush.bf16.msra.mxu0 %v339
  %754 = vmatpush.bf16.msra.mxu0 %v336
  %755 = vmatpush.bf16.msra.mxu0 %v333
  %756 = vmatpush.bf16.msra.mxu0 %v330
  %757 = vmatpush.bf16.msra.mxu0 %v327
  %758 = vmatpush.bf16.msra.mxu0 %v324
  %759 = vmatmul.bf16.gmra.mxu0 %v737
  %v760 = vpop.f32.mrf.mxu0
  %v761 = vadd.f32 0.0, %v760
  %v762 = vpop.f32.mrf.mxu0
  %763 = vdwg.mxu0
  %764 = vmatpush.bf16.msra.mxu0 %v346
  %765 = vmatpush.bf16.msra.mxu0 %v343
  %766 = vmatpush.bf16.msra.mxu0 %v340
  %767 = vmatpush.bf16.msra.mxu0 %v337
  %768 = vmatpush.bf16.msra.mxu0 %v334
  %769 = vmatpush.bf16.msra.mxu0 %v331
  %770 = vmatpush.bf16.msra.mxu0 %v328
  %771 = vmatpush.bf16.msra.mxu0 %v325
  %772 = vmatmul.bf16.gmra.mxu0 %v737
  %v773 = vpop.f32.mrf.mxu0
  %v774 = vadd.f32 0.0, %v773
  %v775 = vpop.f32.mrf.mxu0
  %776 = vdwg.mxu0
  %v777 = vadd.f32 %v734, %v748
  %v778 = vxor.u32 %v777, 2147483648
  %v779 = vmul.f32 %v778, 1.442695
  %v780 = vpow.pop %v779
  %v781 = vadd.f32 %v780, 1.0
  %v782 = vrcp.pop %v781
  %v783 = vmul.f32 %v781, %v782
  %v784 = vsub.f32 1.0, %v783
  %v785 = vmul.f32 %v782, %v784
  %v786 = vadd.f32 %v782, %v785
  %vm787 = vweird.f32 %v781
  %vm788 = vweird.f32 %v782
  %vm789 = vmor %vm787, %vm788
  %v790 = vsel %vm789, %v782, %v786
  %v791 = vand.u32 2147483647, %v781
  %vm792 = vcmp.eq.f32.partialorder %v791, 8.507059e+37
  %v793 = vand.u32 %v781, 2147483648
  %v794 = vor.u32 1.1754944e-38, %v793
  %v795 = vsel %vm792, %v794, %v790
  %v796 = vmul.f32 1.0, %v795
  %v797 = vadd.f32 %v735, %v761
  %v798 = vxor.u32 %v797, 2147483648
  %v799 = vmul.f32 %v798, 1.442695
  %v800 = vpow.pop %v799
  %v801 = vadd.f32 %v800, 1.0
  %v802 = vrcp.pop %v801
  %v803 = vmul.f32 %v801, %v802
  %v804 = vsub.f32 1.0, %v803
  %v805 = vmul.f32 %v802, %v804
  %v806 = vadd.f32 %v802, %v805
  %vm807 = vweird.f32 %v801
  %vm808 = vweird.f32 %v802
  %vm809 = vmor %vm807, %vm808
  %v810 = vsel %vm809, %v802, %v806
  %v811 = vand.u32 2147483647, %v801
  %vm812 = vcmp.eq.f32.partialorder %v811, 8.507059e+37
  %v813 = vand.u32 %v801, 2147483648
  %v814 = vor.u32 1.1754944e-38, %v813
  %v815 = vsel %vm812, %v814, %v810
  %v816 = vmul.f32 1.0, %v815
  %v817 = vadd.f32 %v774, %v451
  %v818 = vmul.f32 %v796, %v817
  %v819 = vadd.f32 %v736, %v818
  %v820 = vtanh.pop %v819
  %v821 = vsub.f32 %v732, %v820
  %v822 = vmul.f32 %v816, %v821
  %v823 = vadd.f32 %v820, %v822
  %s824 = scalar_lea.vmem [#allocation2], 120
  %v825 = vld [vmem:[%s824] sm:$0xff]
  %v826 = vld [vmem:[%s824 + $0x8] sm:$0xff]
  %v827 = vld [vmem:[%s824 + $0x10] sm:$0xff]
  %v828 = vpack.c.bf16 %v823, %v823
  %829 = vmatpush.bf16.msra.mxu0 %v344
  %830 = vmatpush.bf16.msra.mxu0 %v341
  %831 = vmatpush.bf16.msra.mxu0 %v338
  %832 = vmatpush.bf16.msra.mxu0 %v335
  %833 = vmatpush.bf16.msra.mxu0 %v332
  %834 = vmatpush.bf16.msra.mxu0 %v329
  %835 = vmatpush.bf16.msra.mxu0 %v326
  %836 = vmatpush.bf16.msra.mxu0 %v323
  %837 = vmatmul.bf16.gmra.mxu0 %v828
  %v838 = vpop.f32.mrf.mxu0
  %v839 = vadd.f32 0.0, %v838
  %v840 = vpop.f32.mrf.mxu0
  %841 = vdwg.mxu0
  %842 = vmatpush.bf16.msra.mxu0 %v345
  %843 = vmatpush.bf16.msra.mxu0 %v342
  %844 = vmatpush.bf16.msra.mxu0 %v339
  %845 = vmatpush.bf16.msra.mxu0 %v336
  %846 = vmatpush.bf16.msra.mxu0 %v333
  %847 = vmatpush.bf16.msra.mxu0 %v330
  %848 = vmatpush.bf16.msra.mxu0 %v327
  %849 = vmatpush.bf16.msra.mxu0 %v324
  %850 = vmatmul.bf16.gmra.mxu0 %v828
  %v851 = vpop.f32.mrf.mxu0
  %v852 = vadd.f32 0.0, %v851
  %v853 = vpop.f32.mrf.mxu0
  %854 = vdwg.mxu0
  %855 = vmatpush.bf16.msra.mxu0 %v346
  %856 = vmatpush.bf16.msra.mxu0 %v343
  %857 = vmatpush.bf16.msra.mxu0 %v340
  %858 = vmatpush.bf16.msra.mxu0 %v337
  %859 = vmatpush.bf16.msra.mxu0 %v334
  %860 = vmatpush.bf16.msra.mxu0 %v331
  %861 = vmatpush.bf16.msra.mxu0 %v328
  %862 = vmatpush.bf16.msra.mxu0 %v325
  %863 = vmatmul.bf16.gmra.mxu0 %v828
  %v864 = vpop.f32.mrf.mxu0
  %v865 = vadd.f32 0.0, %v864
  %v866 = vpop.f32.mrf.mxu0
  %867 = vdwg.mxu0
  %v868 = vadd.f32 %v825, %v839
  %v869 = vxor.u32 %v868, 2147483648
  %v870 = vmul.f32 %v869, 1.442695
  %v871 = vpow.pop %v870
  %v872 = vadd.f32 %v871, 1.0
  %v873 = vrcp.pop %v872
  %v874 = vmul.f32 %v872, %v873
  %v875 = vsub.f32 1.0, %v874
  %v876 = vmul.f32 %v873, %v875
  %v877 = vadd.f32 %v873, %v876
  %vm878 = vweird.f32 %v872
  %vm879 = vweird.f32 %v873
  %vm880 = vmor %vm878, %vm879
  %v881 = vsel %vm880, %v873, %v877
  %v882 = vand.u32 2147483647, %v872
  %vm883 = vcmp.eq.f32.partialorder %v882, 8.507059e+37
  %v884 = vand.u32 %v872, 2147483648
  %v885 = vor.u32 1.1754944e-38, %v884
  %v886 = vsel %vm883, %v885, %v881
  %v887 = vmul.f32 1.0, %v886
  %v888 = vadd.f32 %v826, %v852
  %v889 = vxor.u32 %v888, 2147483648
  %v890 = vmul.f32 %v889, 1.442695
  %v891 = vpow.pop %v890
  %v892 = vadd.f32 %v891, 1.0
  %v893 = vrcp.pop %v892
  %v894 = vmul.f32 %v892, %v893
  %v895 = vsub.f32 1.0, %v894
  %v896 = vmul.f32 %v893, %v895
  %v897 = vadd.f32 %v893, %v896
  %vm898 = vweird.f32 %v892
  %vm899 = vweird.f32 %v893
  %vm900 = vmor %vm898, %vm899
  %v901 = vsel %vm900, %v893, %v897
  %v902 = vand.u32 2147483647, %v892
  %vm903 = vcmp.eq.f32.partialorder %v902, 8.507059e+37
  %v904 = vand.u32 %v892, 2147483648
  %v905 = vor.u32 1.1754944e-38, %v904
  %v906 = vsel %vm903, %v905, %v901
  %v907 = vmul.f32 1.0, %v906
  %v908 = vadd.f32 %v865, %v451
  %v909 = vmul.f32 %v887, %v908
  %v910 = vadd.f32 %v827, %v909
  %v911 = vtanh.pop %v910
  %v912 = vsub.f32 %v823, %v911
  %v913 = vmul.f32 %v907, %v912
  %v914 = vadd.f32 %v911, %v913
  %s915 = scalar_lea.vmem [#allocation2], 144
  %v916 = vld [vmem:[%s915] sm:$0xff]
  %v917 = vld [vmem:[%s915 + $0x8] sm:$0xff]
  %v918 = vld [vmem:[%s915 + $0x10] sm:$0xff]
  %v919 = vpack.c.bf16 %v914, %v914
  %920 = vmatpush.bf16.msra.mxu0 %v344
  %921 = vmatpush.bf16.msra.mxu0 %v341
  %922 = vmatpush.bf16.msra.mxu0 %v338
  %923 = vmatpush.bf16.msra.mxu0 %v335
  %924 = vmatpush.bf16.msra.mxu0 %v332
  %925 = vmatpush.bf16.msra.mxu0 %v329
  %926 = vmatpush.bf16.msra.mxu0 %v326
  %927 = vmatpush.bf16.msra.mxu0 %v323
  %928 = vmatmul.bf16.gmra.mxu0 %v919
  %v929 = vpop.f32.mrf.mxu0
  %v930 = vadd.f32 0.0, %v929
  %v931 = vpop.f32.mrf.mxu0
  %932 = vdwg.mxu0
  %933 = vmatpush.bf16.msra.mxu0 %v345
  %934 = vmatpush.bf16.msra.mxu0 %v342
  %935 = vmatpush.bf16.msra.mxu0 %v339
  %936 = vmatpush.bf16.msra.mxu0 %v336
  %937 = vmatpush.bf16.msra.mxu0 %v333
  %938 = vmatpush.bf16.msra.mxu0 %v330
  %939 = vmatpush.bf16.msra.mxu0 %v327
  %940 = vmatpush.bf16.msra.mxu0 %v324
  %941 = vmatmul.bf16.gmra.mxu0 %v919
  %v942 = vpop.f32.mrf.mxu0
  %v943 = vadd.f32 0.0, %v942
  %v944 = vpop.f32.mrf.mxu0
  %945 = vdwg.mxu0
  %946 = vmatpush.bf16.msra.mxu0 %v346
  %947 = vmatpush.bf16.msra.mxu0 %v343
  %948 = vmatpush.bf16.msra.mxu0 %v340
  %949 = vmatpush.bf16.msra.mxu0 %v337
  %950 = vmatpush.bf16.msra.mxu0 %v334
  %951 = vmatpush.bf16.msra.mxu0 %v331
  %952 = vmatpush.bf16.msra.mxu0 %v328
  %953 = vmatpush.bf16.msra.mxu0 %v325
  %954 = vmatmul.bf16.gmra.mxu0 %v919
  %v955 = vpop.f32.mrf.mxu0
  %v956 = vadd.f32 0.0, %v955
  %v957 = vpop.f32.mrf.mxu0
  %958 = vdwg.mxu0
  %v959 = vadd.f32 %v916, %v930
  %v960 = vxor.u32 %v959, 2147483648
  %v961 = vmul.f32 %v960, 1.442695
  %v962 = vpow.pop %v961
  %v963 = vadd.f32 %v962, 1.0
  %v964 = vrcp.pop %v963
  %v965 = vmul.f32 %v963, %v964
  %v966 = vsub.f32 1.0, %v965
  %v967 = vmul.f32 %v964, %v966
  %v968 = vadd.f32 %v964, %v967
  %vm969 = vweird.f32 %v963
  %vm970 = vweird.f32 %v964
  %vm971 = vmor %vm969, %vm970
  %v972 = vsel %vm971, %v964, %v968
  %v973 = vand.u32 2147483647, %v963
  %vm974 = vcmp.eq.f32.partialorder %v973, 8.507059e+37
  %v975 = vand.u32 %v963, 2147483648
  %v976 = vor.u32 1.1754944e-38, %v975
  %v977 = vsel %vm974, %v976, %v972
  %v978 = vmul.f32 1.0, %v977
  %v979 = vadd.f32 %v917, %v943
  %v980 = vxor.u32 %v979, 2147483648
  %v981 = vmul.f32 %v980, 1.442695
  %v982 = vpow.pop %v981
  %v983 = vadd.f32 %v982, 1.0
  %v984 = vrcp.pop %v983
  %v985 = vmul.f32 %v983, %v984
  %v986 = vsub.f32 1.0, %v985
  %v987 = vmul.f32 %v984, %v986
  %v988 = vadd.f32 %v984, %v987
  %vm989 = vweird.f32 %v983
  %vm990 = vweird.f32 %v984
  %vm991 = vmor %vm989, %vm990
  %v992 = vsel %vm991, %v984, %v988
  %v993 = vand.u32 2147483647, %v983
  %vm994 = vcmp.eq.f32.partialorder %v993, 8.507059e+37
  %v995 = vand.u32 %v983, 2147483648
  %v996 = vor.u32 1.1754944e-38, %v995
  %v997 = vsel %vm994, %v996, %v992
  %v998 = vmul.f32 1.0, %v997
  %v999 = vadd.f32 %v956, %v451
  %v1000 = vmul.f32 %v978, %v999
  %v1001 = vadd.f32 %v918, %v1000
  %v1002 = vtanh.pop %v1001
  %v1003 = vsub.f32 %v914, %v1002
  %v1004 = vmul.f32 %v998, %v1003
  %v1005 = vadd.f32 %v1002, %v1004
  %s1006 = scalar_lea.vmem [#allocation2], 168
  %v1007 = vld [vmem:[%s1006] sm:$0xff]
  %v1008 = vld [vmem:[%s1006 + $0x8] sm:$0xff]
  %v1009 = vld [vmem:[%s1006 + $0x10] sm:$0xff]
  %v1010 = vpack.c.bf16 %v1005, %v1005
  %1011 = vmatpush.bf16.msra.mxu0 %v344
  %1012 = vmatpush.bf16.msra.mxu0 %v341
  %1013 = vmatpush.bf16.msra.mxu0 %v338
  %1014 = vmatpush.bf16.msra.mxu0 %v335
  %1015 = vmatpush.bf16.msra.mxu0 %v332
  %1016 = vmatpush.bf16.msra.mxu0 %v329
  %1017 = vmatpush.bf16.msra.mxu0 %v326
  %1018 = vmatpush.bf16.msra.mxu0 %v323
  %1019 = vmatmul.bf16.gmra.mxu0 %v1010
  %v1020 = vpop.f32.mrf.mxu0
  %v1021 = vadd.f32 0.0, %v1020
  %v1022 = vpop.f32.mrf.mxu0
  %1023 = vdwg.mxu0
  %1024 = vmatpush.bf16.msra.mxu0 %v345
  %1025 = vmatpush.bf16.msra.mxu0 %v342
  %1026 = vmatpush.bf16.msra.mxu0 %v339
  %1027 = vmatpush.bf16.msra.mxu0 %v336
  %1028 = vmatpush.bf16.msra.mxu0 %v333
  %1029 = vmatpush.bf16.msra.mxu0 %v330
  %1030 = vmatpush.bf16.msra.mxu0 %v327
  %1031 = vmatpush.bf16.msra.mxu0 %v324
  %1032 = vmatmul.bf16.gmra.mxu0 %v1010
  %v1033 = vpop.f32.mrf.mxu0
  %v1034 = vadd.f32 0.0, %v1033
  %v1035 = vpop.f32.mrf.mxu0
  %1036 = vdwg.mxu0
  %1037 = vmatpush.bf16.msra.mxu0 %v346
  %1038 = vmatpush.bf16.msra.mxu0 %v343
  %1039 = vmatpush.bf16.msra.mxu0 %v340
  %1040 = vmatpush.bf16.msra.mxu0 %v337
  %1041 = vmatpush.bf16.msra.mxu0 %v334
  %1042 = vmatpush.bf16.msra.mxu0 %v331
  %1043 = vmatpush.bf16.msra.mxu0 %v328
  %1044 = vmatpush.bf16.msra.mxu0 %v325
  %1045 = vmatmul.bf16.gmra.mxu0 %v1010
  %v1046 = vpop.f32.mrf.mxu0
  %v1047 = vadd.f32 0.0, %v1046
  %v1048 = vpop.f32.mrf.mxu0
  %1049 = vdwg.mxu0
  %v1050 = vadd.f32 %v1007, %v1021
  %v1051 = vxor.u32 %v1050, 2147483648
  %v1052 = vmul.f32 %v1051, 1.442695
  %v1053 = vpow.pop %v1052
  %v1054 = vadd.f32 %v1053, 1.0
  %v1055 = vrcp.pop %v1054
  %v1056 = vmul.f32 %v1054, %v1055
  %v1057 = vsub.f32 1.0, %v1056
  %v1058 = vmul.f32 %v1055, %v1057
  %v1059 = vadd.f32 %v1055, %v1058
  %vm1060 = vweird.f32 %v1054
  %vm1061 = vweird.f32 %v1055
  %vm1062 = vmor %vm1060, %vm1061
  %v1063 = vsel %vm1062, %v1055, %v1059
  %v1064 = vand.u32 2147483647, %v1054
  %vm1065 = vcmp.eq.f32.partialorder %v1064, 8.507059e+37
  %v1066 = vand.u32 %v1054, 2147483648
  %v1067 = vor.u32 1.1754944e-38, %v1066
  %v1068 = vsel %vm1065, %v1067, %v1063
  %v1069 = vmul.f32 1.0, %v1068
  %v1070 = vadd.f32 %v1008, %v1034
  %v1071 = vxor.u32 %v1070, 2147483648
  %v1072 = vmul.f32 %v1071, 1.442695
  %v1073 = vpow.pop %v1072
  %v1074 = vadd.f32 %v1073, 1.0
  %v1075 = vrcp.pop %v1074
  %v1076 = vmul.f32 %v1074, %v1075
  %v1077 = vsub.f32 1.0, %v1076
  %v1078 = vmul.f32 %v1075, %v1077
  %v1079 = vadd.f32 %v1075, %v1078
  %vm1080 = vweird.f32 %v1074
  %vm1081 = vweird.f32 %v1075
  %vm1082 = vmor %vm1080, %vm1081
  %v1083 = vsel %vm1082, %v1075, %v1079
  %v1084 = vand.u32 2147483647, %v1074
  %vm1085 = vcmp.eq.f32.partialorder %v1084, 8.507059e+37
  %v1086 = vand.u32 %v1074, 2147483648
  %v1087 = vor.u32 1.1754944e-38, %v1086
  %v1088 = vsel %vm1085, %v1087, %v1083
  %v1089 = vmul.f32 1.0, %v1088
  %v1090 = vadd.f32 %v1047, %v451
  %v1091 = vmul.f32 %v1069, %v1090
  %v1092 = vadd.f32 %v1009, %v1091
  %v1093 = vtanh.pop %v1092
  %v1094 = vsub.f32 %v1005, %v1093
  %v1095 = vmul.f32 %v1089, %v1094
  %v1096 = vadd.f32 %v1093, %v1095
  %1097 = vst [vmem:[#allocation3] sm:$0xff] %v1096
  // Predicated region
  $region34: #{encoder_forward.1} parent=0 // pred_check
    %p1098 = pneg %p27
  $region35: #{encoder_forward.1} parent=0 // pred_check_branch
    %1100 = sbr.rel (%p1098) target = $region37
  $region36: #{encoder_forward.1} parent=0 // pred_region
    %v1101 = vld [vmem:[#allocation3] sm:$0xff]
    %v1102 = vpack.c.bf16 %v1101, %v1101
    %v1103 = vld [vmem:[%s5] sm:$0xf]
    %v1104 = vld [vmem:[%s5 + $0x4] sm:$0xf]
    %v1105 = vld [vmem:[%s5 + $0x8] sm:$0xf]
    %v1106 = vld [vmem:[%s5 + $0xc] sm:$0xf]
    %v1107 = vld [vmem:[%s5 + $0x10] sm:$0xf]
    %v1108 = vld [vmem:[%s5 + $0x14] sm:$0xf]
    %v1109 = vld [vmem:[%s5 + $0x18] sm:$0xf]
    %v1110 = vld [vmem:[%s5 + $0x1c] sm:$0xf]
    %v1111 = vld [vmem:[%s5 + $0x20] sm:$0xf]
    %v1112 = vld [vmem:[%s5 + $0x24] sm:$0xf]
    %v1113 = vld [vmem:[%s5 + $0x28] sm:$0xf]
    %v1114 = vld [vmem:[%s5 + $0x2c] sm:$0xf]
    %v1115 = vld [vmem:[%s5 + $0x30] sm:$0xf]
    %v1116 = vld [vmem:[%s5 + $0x34] sm:$0xf]
    %v1117 = vld [vmem:[%s5 + $0x38] sm:$0xf]
    %v1118 = vld [vmem:[%s5 + $0x3c] sm:$0xf]
    %v1119 = vld [vmem:[%s6] sm:$0x1]
    %v1121 = vperm.slane %v1119, 0
    %v1139 = vunpack.c.l.b16 %v1103
    %v1140 = vunpack.c.l.b16 %v1104
    %v1141 = vunpack.c.l.b16 %v1105
    %v1142 = vunpack.c.l.b16 %v1106
    %v1143 = vunpack.c.l.b16 %v1107
    %v1144 = vunpack.c.l.b16 %v1108
    %v1145 = vunpack.c.l.b16 %v1109
    %v1146 = vunpack.c.l.b16 %v1110
    %v1147 = vunpack.c.l.b16 %v1111
    %v1148 = vunpack.c.l.b16 %v1112
    %v1149 = vunpack.c.l.b16 %v1113
    %v1150 = vunpack.c.l.b16 %v1114
    %v1151 = vunpack.c.l.b16 %v1115
    %v1152 = vunpack.c.l.b16 %v1116
    %v1153 = vunpack.c.l.b16 %v1117
    %v1154 = vunpack.c.l.b16 %v1118
    %v1155 = vpack.c.b16 %v1140, %v1139
    %v1156 = vpack.c.b16 %v1142, %v1141
    %v1157 = vpack.c.b16 %v1144, %v1143
    %v1158 = vpack.c.b16 %v1146, %v1145
    %v1159 = vpack.c.b16 %v1148, %v1147
    %v1160 = vpack.c.b16 %v1150, %v1149
    %v1161 = vpack.c.b16 %v1152, %v1151
    %v1162 = vpack.c.b16 %v1154, %v1153
    %1171 = vmatpush.bf16.msra.mxu0 %v1162
    %1172 = vmatpush.bf16.msra.mxu0 %v1161
    %1173 = vmatpush.bf16.msra.mxu0 %v1160
    %1174 = vmatpush.bf16.msra.mxu0 %v1159
    %1175 = vmatpush.bf16.msra.mxu0 %v1158
    %1176 = vmatpush.bf16.msra.mxu0 %v1157
    %1177 = vmatpush.bf16.msra.mxu0 %v1156
    %1178 = vmatpush.bf16.msra.mxu0 %v1155
    %1179 = vmatmul.bf16.gmra.mxu0 %v1102
    %v1180 = vpop.f32.mrf.mxu0
    %v1181 = vadd.f32 %v1121, %v1180
    %v1182 = vpop.f32.mrf.mxu0
    %1183 = vdwg.mxu0
    %vm1184 = vcmask 261120
    %1185 = vst.msk [vmem:[%s7] sm:$0xff] %vm1184, %v1181
  $region37: #{encoder_forward.1} parent=0 // pred_fallthru
    _
  // Predicated region
  $region38: #{encoder_forward.1} parent=0 // pred_check
    _
  $region39: #{encoder_forward.1} parent=0 // pred_check_branch
    %1187 = sbr.rel (0) target = $region41
  $region40: #{encoder_forward.1} parent=0 // pred_region
    _
  $region41: #{encoder_forward.1} parent=0 // pred_fallthru
    _
  // Predicated region
  $region42: #{encoder_forward.1} parent=0 // pred_check
    _
  $region43: #{encoder_forward.1} parent=0 // pred_check_branch
    %1189 = sbr.rel (0) target = $region45
  $region44: #{encoder_forward.1} parent=0 // pred_region
    _
  $region45: #{encoder_forward.1} parent=0 // pred_fallthru
    _

</llo_original>
